<compile_context>
chip_gen: v7x
topology: tpu7x:2x2x1
jax: 0.10.0
libtpu: 0.0.40
codegen_flags: <defaults>
</compile_context>

<pallas_src>
import jax
import jax.numpy as jnp
from jax import lax
from jax.experimental import pallas as pl
from jax.experimental.pallas import tpu as pltpu


def lstm_fc_kernel(x_ref, w_ih_ref, w_hh_ref, b_ref, fc_w_ref, fc_b_ref,
                   out_ref, xw_ref):
    """Fused LSTM recurrence + flatten-Linear + sigmoid for one batch tile.

    x_ref    : (T, Bt, E)   bf16 time-major embedded input (batch tile)
    w_ih_ref : (E, 4H)      bf16 input->gates weights (gate order i,f,g,o)
    w_hh_ref : (H, 4H)      bf16 hidden->gates weights
    b_ref    : (1, 4H)      f32  b_ih + b_hh
    fc_w_ref : (T, 1, H)    f32  final Linear weight, chunked per timestep
    fc_b_ref : (1, 1)       f32  final Linear bias
    out_ref  : (1, Bt)      f32  lane-dense sigmoid(Linear(flatten(lstm_outputs)))
    xw_ref   : (T*Bt, 4H)   f32  VMEM scratch for the hoisted input projection
    """
    T, Bt, E = x_ref.shape
    H = w_hh_ref.shape[0]

    # ---- Hoisted input projection: one big MXU matmul outside the serial loop,
    #      staged through VMEM scratch so only a (Bt,4H) slice is live per step. -------
    x_all = x_ref[...].reshape(T * Bt, E)                              # bf16
    xw_ref[...] = (jnp.dot(x_all, w_ih_ref[...],
                           preferred_element_type=jnp.float32)
                   + b_ref[...])                                       # (T*Bt, 4H) f32

    # Column mask selecting the tanh (g) gate; hoisted out of the loop.
    col = lax.broadcasted_iota(jnp.int32, (Bt, 4 * H), dimension=1)
    is_g = (col >= 2 * H) & (col < 3 * H)

    h = jnp.zeros((Bt, H), jnp.float32)
    c = jnp.zeros((Bt, H), jnp.float32)
    acc = jnp.zeros((Bt, H), jnp.float32)   # lane-dense FC accumulator

    # Static unroll (T small/fixed): only h @ W_hh is on the serial MXU critical path.
    for t in range(T):
        gates = xw_ref[t * Bt:(t + 1) * Bt, :] + jnp.dot(
            h.astype(jnp.bfloat16), w_hh_ref[...],
            preferred_element_type=jnp.float32)                        # (Bt, 4H) f32

        # Single EUP pass for all 4 gates: sigmoid(x) = 0.5*tanh(0.5*x) + 0.5.
        arg = jnp.where(is_g, gates, 0.5 * gates)
        y = jnp.tanh(arg)
        act = jnp.where(is_g, y, 0.5 * y + 0.5)

        i_g = act[:, 0:H]
        f_g = act[:, H:2 * H]
        g_g = act[:, 2 * H:3 * H]
        o_g = act[:, 3 * H:4 * H]

        c = f_g * c + i_g * g_g
        h = o_g * jnp.tanh(c)

        # Flatten+Linear accumulated as a VPU fma (fc_w_ref[t] is (1,H), broadcast over Bt).
        acc = acc + h * fc_w_ref[t]

    # Final reduction over H done as ONE tiny MXU dot so the result lands lane-dense
    # (batch on the 128-wide lane axis) -> unmasked-friendly output store.
    ones_row = jnp.ones((1, H), jnp.float32)
    logit = lax.dot_general(ones_row, acc, (((1,), (1,)), ((), ())),
                            preferred_element_type=jnp.float32)        # (1, Bt)
    out_ref[...] = jax.nn.sigmoid(logit + fc_b_ref[...])


def init_params(key, vocab_size, embedding_dim, hidden_dim, text_len):
    """Deterministic parameter init mirroring the PyTorch module's shapes."""
    k_emb, k_wih, k_whh, k_bih, k_bhh, k_fcw, k_fcb = jax.random.split(key, 7)
    H, E, T = hidden_dim, embedding_dim, text_len

    emb = jax.random.normal(k_emb, (vocab_size, E), jnp.float32)
    emb = emb.at[0].set(0.0)                       # padding_idx=0 row is zero

    s = 1.0 / jnp.sqrt(H)
    w_ih = jax.random.uniform(k_wih, (4 * H, E), jnp.float32, -s, s)
    w_hh = jax.random.uniform(k_whh, (4 * H, H), jnp.float32, -s, s)
    b_ih = jax.random.uniform(k_bih, (4 * H,), jnp.float32, -s, s)
    b_hh = jax.random.uniform(k_bhh, (4 * H,), jnp.float32, -s, s)

    sf = 1.0 / jnp.sqrt(T * H)
    fc_w = jax.random.uniform(k_fcw, (1, T * H), jnp.float32, -sf, sf)
    fc_b = jax.random.uniform(k_fcb, (1,), jnp.float32, -sf, sf)

    return dict(emb=emb, w_ih=w_ih, w_hh=w_hh, b_ih=b_ih, b_hh=b_hh,
                fc_w=fc_w, fc_b=fc_b)


def _round_up(x, m):
    return ((x + m - 1) // m) * m


def _pick_batch_tile(batch, max_tile=128):
    """Fill MXU M: multiple of 16 (bf16 pack), cap at MXU height, and prefer >=2 grid
    steps (two v7x TensorCores) when the batch is big enough — without padding a tiny
    batch out to 128 garbage rows."""
    bt_full = _round_up(batch, 16)
    if bt_full < 32:                       # can't usefully split across two tiles
        return min(bt_full, max_tile)
    bt = _round_up((batch + 1) // 2, 16)   # aim for >=2 "parallel" grid steps
    return min(bt, max_tile)


def lstm_forward(text, params, hidden_dim, text_len, *, max_batch_tile=128):
    """text: (B, T) int32 token ids -> (B, 1) float32 probabilities."""
    B, T = text.shape
    H = hidden_dim
    E = params["emb"].shape[1]
    assert T == text_len

    # Glue: embedding gather + weight re-layout (pure JAX).
    x = jnp.take(params["emb"], text, axis=0)                 # (B, T, E)
    # Time-major + bf16: halves streamed-x DMA bytes and the double-buffered VMEM tile.
    x_tm = jnp.transpose(x, (1, 0, 2)).astype(jnp.bfloat16)   # (T, B, E)

    bt = _pick_batch_tile(B, max_batch_tile)
    Bp = _round_up(B, bt)
    if Bp != B:
        x_tm = jnp.pad(x_tm, ((0, 0), (0, Bp - B), (0, 0)))

    # bf16 matmul operands (f32 accumulation inside the kernel).
    w_ih_t = params["w_ih"].T.astype(jnp.bfloat16)            # (E, 4H), gates i,f,g,o
    w_hh_t = params["w_hh"].T.astype(jnp.bfloat16)            # (H, 4H)
    b = (params["b_ih"] + params["b_hh"]).reshape(1, 4 * H).astype(jnp.float32)
    fc_w = params["fc_w"].reshape(T, 1, H).astype(jnp.float32)  # t-major then h (flatten order)
    fc_b = params["fc_b"].reshape(1, 1).astype(jnp.float32)

    n_tiles = Bp // bt
    cost = pl.CostEstimate(
        flops=2 * T * Bp * (E + H) * 4 * H + 2 * Bp * H,
        transcendentals=5 * T * Bp * H,
        bytes_accessed=(int(x_tm.size) * 2 + int(w_ih_t.size) * 2 + int(w_hh_t.size) * 2
                        + (int(b.size) + int(fc_w.size) + int(fc_b.size)) * 4 + Bp * 4),
    )

    out = pl.pallas_call(
        lstm_fc_kernel,
        out_shape=jax.ShapeDtypeStruct((n_tiles, bt), jnp.float32),
        grid=(n_tiles,),
        in_specs=[
            pl.BlockSpec((T, bt, E), lambda bb: (0, bb, 0)),          # x: tiled over batch
            pl.BlockSpec((E, 4 * H), lambda bb: (0, 0)),              # w_ih
            pl.BlockSpec((H, 4 * H), lambda bb: (0, 0)),              # w_hh
            pl.BlockSpec((1, 4 * H), lambda bb: (0, 0)),              # bias
            pl.BlockSpec((T, 1, H), lambda bb: (0, 0, 0)),            # fc_w
            pl.BlockSpec((1, 1), lambda bb: (0, 0)),                  # fc_b
        ],
        out_specs=pl.BlockSpec((1, bt), lambda bb: (bb, 0)),          # lane-dense output
        scratch_shapes=[pltpu.VMEM((T * bt, 4 * H), jnp.float32)],    # hoisted projection
        compiler_params=pltpu.CompilerParams(
            dimension_semantics=("parallel",),                        # batch tiles -> 2 TCs on v7x
        ),
        cost_estimate=cost,
    )(x_tm, w_ih_t, w_hh_t, b, fc_w, fc_b)

    # (n_tiles, bt) row-major flatten == padded batch order.
    return out.reshape(Bp, 1)[:B]


if __name__ == "__main__":
    # Small, forward-consistent shapes.
    VOCAB = 100
    HIDDEN = 32
    EMBED = 16
    TEXT_LEN = 8
    BATCH = 2

    key = jax.random.PRNGKey(0)
    k_params, k_text = jax.random.split(key)

    params = init_params(k_params, VOCAB, EMBED, HIDDEN, TEXT_LEN)
    text = jax.random.randint(k_text, (BATCH, TEXT_LEN), 0, VOCAB, dtype=jnp.int32)

    out = lstm_forward(text, params, HIDDEN, TEXT_LEN)
    out = jax.block_until_ready(out)
    assert out.shape == (BATCH, 1) and out.dtype == jnp.float32
    assert bool(jnp.all(jnp.isfinite(out)))
    assert bool(jnp.all((out > 0.0) & (out < 1.0)))
    print("KERNEL_OK")
</pallas_src>

<mosaic_0001>
module attributes {stable_mosaic.version = 11 : i64} {
  func.func @lstm_fc_kernel(%arg0: i32, %arg1: memref<8x16x16xbf16, #tpu.memory_space<vmem>>, %arg2: memref<16x128xbf16, #tpu.memory_space<vmem>>, %arg3: memref<32x128xbf16, #tpu.memory_space<vmem>>, %arg4: memref<1x128xf32, #tpu.memory_space<vmem>>, %arg5: memref<8x1x32xf32, #tpu.memory_space<vmem>>, %arg6: memref<1x1xf32, #tpu.memory_space<vmem>>, %arg7: memref<1x16xf32, #tpu.memory_space<vmem>>, %arg8: memref<128x128xf32, #tpu.memory_space<vmem>>) attributes {dimension_semantics = [#tpu.dimension_semantics<parallel>], iteration_bounds = array<i64: 1>, scalar_prefetch = 0 : i64, scratch_operands = 1 : i64, tpu.core_type = #tpu.core_type<tc>, window_params = [{transform_indices = @transform_0, window_bounds = array<i64: 8, 16, 16>}, {pipeline_mode = #tpu.pipeline_mode<synchronous>, transform_indices = @transform_1, window_bounds = array<i64: 16, 128>}, {pipeline_mode = #tpu.pipeline_mode<synchronous>, transform_indices = @transform_2, window_bounds = array<i64: 32, 128>}, {pipeline_mode = #tpu.pipeline_mode<synchronous>, transform_indices = @transform_3, window_bounds = array<i64: 1, 128>}, {pipeline_mode = #tpu.pipeline_mode<synchronous>, transform_indices = @transform_4, window_bounds = array<i64: 8, 1, 32>}, {pipeline_mode = #tpu.pipeline_mode<synchronous>, transform_indices = @transform_5, window_bounds = array<i64: 1, 1>}, {transform_indices = @transform_6, window_bounds = array<i64: 1, 16>}]} {
    %c0 = arith.constant 0 : index
    %c0_0 = arith.constant 0 : index
    %c0_1 = arith.constant 0 : index
    %0 = vector.load %arg1[%c0, %c0_0, %c0_1] : memref<8x16x16xbf16, #tpu.memory_space<vmem>>, vector<8x16x16xbf16>
    %1 = vector.shape_cast %0 : vector<8x16x16xbf16> to vector<128x16xbf16>
    %c0_2 = arith.constant 0 : index
    %c0_3 = arith.constant 0 : index
    %2 = vector.load %arg2[%c0_2, %c0_3] : memref<16x128xbf16, #tpu.memory_space<vmem>>, vector<16x128xbf16>
    %cst = arith.constant dense<0.000000e+00> : vector<128x128xf32>
    %3 = tpu.matmul %1, %2, %cst {dimension_numbers = #tpu.dot_dimension_numbers<[1], [0], [0], [1], [0, 0, 1, 1], [], []>} : vector<128x16xbf16>, vector<16x128xbf16>, vector<128x128xf32> -> vector<128x128xf32>
    %c0_4 = arith.constant 0 : index
    %c0_5 = arith.constant 0 : index
    %4 = vector.load %arg4[%c0_4, %c0_5] : memref<1x128xf32, #tpu.memory_space<vmem>>, vector<1x128xf32>
    %5 = vector.broadcast %4 : vector<1x128xf32> to vector<128x128xf32>
    %6 = arith.addf %3, %5 : vector<128x128xf32>
    %c0_6 = arith.constant 0 : index
    %c0_7 = arith.constant 0 : index
    %7 = vector.load %arg8[%c0_6, %c0_7] : memref<128x128xf32, #tpu.memory_space<vmem>>, vector<128x128xf32>
    tpu.vector_store %arg8[%c0_6, %c0_7], %6 {strides = array<i32>} : memref<128x128xf32, #tpu.memory_space<vmem>>, vector<128x128xf32>,
    %8 = tpu.iota {dimensions = array<i32: 1>} : vector<16x128xi32>
    %c64_i32 = arith.constant 64 : i32
    %9 = vector.broadcast %c64_i32 : i32 to vector<16x128xi32>
    %10 = arith.cmpi sge, %8, %9 : vector<16x128xi32>
    %c96_i32 = arith.constant 96 : i32
    %11 = vector.broadcast %c96_i32 : i32 to vector<16x128xi32>
    %12 = arith.cmpi slt, %8, %11 : vector<16x128xi32>
    %13 = arith.andi %10, %12 : vector<16x128xi1>
    %cst_8 = arith.constant 0.000000e+00 : f32
    %14 = vector.broadcast %cst_8 : f32 to vector<16x32xf32>
    %cst_9 = arith.constant 0.000000e+00 : f32
    %15 = vector.broadcast %cst_9 : f32 to vector<16x32xf32>
    %cst_10 = arith.constant 0.000000e+00 : f32
    %16 = vector.broadcast %cst_10 : f32 to vector<16x32xf32>
    %c0_11 = arith.constant 0 : index
    %c0_12 = arith.constant 0 : index
    %17 = vector.load %arg8[%c0_11, %c0_12] : memref<128x128xf32, #tpu.memory_space<vmem>>, vector<16x128xf32>
    %18 = arith.truncf %14 : vector<16x32xf32> to vector<16x32xbf16>
    %c0_13 = arith.constant 0 : index
    %c0_14 = arith.constant 0 : index
    %19 = vector.load %arg3[%c0_13, %c0_14] : memref<32x128xbf16, #tpu.memory_space<vmem>>, vector<32x128xbf16>
    %cst_15 = arith.constant dense<0.000000e+00> : vector<16x128xf32>
    %20 = tpu.matmul %18, %19, %cst_15 {dimension_numbers = #tpu.dot_dimension_numbers<[1], [0], [0], [1], [0, 0, 1, 1], [], []>} : vector<16x32xbf16>, vector<32x128xbf16>, vector<16x128xf32> -> vector<16x128xf32>
    %21 = arith.addf %17, %20 : vector<16x128xf32>
    %cst_16 = arith.constant 5.000000e-01 : f32
    %22 = vector.broadcast %cst_16 : f32 to vector<16x128xf32>
    %23 = arith.mulf %22, %21 : vector<16x128xf32>
    %24 = arith.select %13, %21, %23 : vector<16x128xi1>, vector<16x128xf32>
    %25 = math.tanh %24 : vector<16x128xf32>
    %cst_17 = arith.constant 5.000000e-01 : f32
    %26 = vector.broadcast %cst_17 : f32 to vector<16x128xf32>
    %27 = arith.mulf %26, %25 : vector<16x128xf32>
    %cst_18 = arith.constant 5.000000e-01 : f32
    %28 = vector.broadcast %cst_18 : f32 to vector<16x128xf32>
    %29 = arith.addf %27, %28 : vector<16x128xf32>
    %30 = arith.select %13, %25, %29 : vector<16x128xi1>, vector<16x128xf32>
    %31 = vector.extract_strided_slice %30 {offsets = [0, 0], sizes = [16, 32], strides = [1, 1]} : vector<16x128xf32> to vector<16x32xf32>
    %32 = vector.extract_strided_slice %30 {offsets = [0, 32], sizes = [16, 32], strides = [1, 1]} : vector<16x128xf32> to vector<16x32xf32>
    %33 = vector.extract_strided_slice %30 {offsets = [0, 64], sizes = [16, 32], strides = [1, 1]} : vector<16x128xf32> to vector<16x32xf32>
    %34 = vector.extract_strided_slice %30 {offsets = [0, 96], sizes = [16, 32], strides = [1, 1]} : vector<16x128xf32> to vector<16x32xf32>
    %35 = arith.mulf %32, %15 : vector<16x32xf32>
    %36 = arith.mulf %31, %33 : vector<16x32xf32>
    %37 = arith.addf %35, %36 : vector<16x32xf32>
    %38 = math.tanh %37 : vector<16x32xf32>
    %39 = arith.mulf %34, %38 : vector<16x32xf32>
    %c0_19 = arith.constant 0 : index
    %c0_20 = arith.constant 0 : index
    %c0_21 = arith.constant 0 : index
    %40 = vector.load %arg5[%c0_19, %c0_20, %c0_21] : memref<8x1x32xf32, #tpu.memory_space<vmem>>, vector<1x1x32xf32>
    %41 = vector.shape_cast %40 : vector<1x1x32xf32> to vector<1x32xf32>
    %42 = vector.broadcast %41 : vector<1x32xf32> to vector<16x32xf32>
    %43 = arith.mulf %39, %42 : vector<16x32xf32>
    %44 = arith.addf %16, %43 : vector<16x32xf32>
    %c16 = arith.constant 16 : index
    %c0_22 = arith.constant 0 : index
    %45 = vector.load %arg8[%c16, %c0_22] : memref<128x128xf32, #tpu.memory_space<vmem>>, vector<16x128xf32>
    %46 = arith.truncf %39 : vector<16x32xf32> to vector<16x32xbf16>
    %c0_23 = arith.constant 0 : index
    %c0_24 = arith.constant 0 : index
    %47 = vector.load %arg3[%c0_23, %c0_24] : memref<32x128xbf16, #tpu.memory_space<vmem>>, vector<32x128xbf16>
    %cst_25 = arith.constant dense<0.000000e+00> : vector<16x128xf32>
    %48 = tpu.matmul %46, %47, %cst_25 {dimension_numbers = #tpu.dot_dimension_numbers<[1], [0], [0], [1], [0, 0, 1, 1], [], []>} : vector<16x32xbf16>, vector<32x128xbf16>, vector<16x128xf32> -> vector<16x128xf32>
    %49 = arith.addf %45, %48 : vector<16x128xf32>
    %cst_26 = arith.constant 5.000000e-01 : f32
    %50 = vector.broadcast %cst_26 : f32 to vector<16x128xf32>
    %51 = arith.mulf %50, %49 : vector<16x128xf32>
    %52 = arith.select %13, %49, %51 : vector<16x128xi1>, vector<16x128xf32>
    %53 = math.tanh %52 : vector<16x128xf32>
    %cst_27 = arith.constant 5.000000e-01 : f32
    %54 = vector.broadcast %cst_27 : f32 to vector<16x128xf32>
    %55 = arith.mulf %54, %53 : vector<16x128xf32>
    %cst_28 = arith.constant 5.000000e-01 : f32
    %56 = vector.broadcast %cst_28 : f32 to vector<16x128xf32>
    %57 = arith.addf %55, %56 : vector<16x128xf32>
    %58 = arith.select %13, %53, %57 : vector<16x128xi1>, vector<16x128xf32>
    %59 = vector.extract_strided_slice %58 {offsets = [0, 0], sizes = [16, 32], strides = [1, 1]} : vector<16x128xf32> to vector<16x32xf32>
    %60 = vector.extract_strided_slice %58 {offsets = [0, 32], sizes = [16, 32], strides = [1, 1]} : vector<16x128xf32> to vector<16x32xf32>
    %61 = vector.extract_strided_slice %58 {offsets = [0, 64], sizes = [16, 32], strides = [1, 1]} : vector<16x128xf32> to vector<16x32xf32>
    %62 = vector.extract_strided_slice %58 {offsets = [0, 96], sizes = [16, 32], strides = [1, 1]} : vector<16x128xf32> to vector<16x32xf32>
    %63 = arith.mulf %60, %37 : vector<16x32xf32>
    %64 = arith.mulf %59, %61 : vector<16x32xf32>
    %65 = arith.addf %63, %64 : vector<16x32xf32>
    %66 = math.tanh %65 : vector<16x32xf32>
    %67 = arith.mulf %62, %66 : vector<16x32xf32>
    %c1 = arith.constant 1 : index
    %c0_29 = arith.constant 0 : index
    %c0_30 = arith.constant 0 : index
    %68 = vector.load %arg5[%c1, %c0_29, %c0_30] : memref<8x1x32xf32, #tpu.memory_space<vmem>>, vector<1x1x32xf32>
    %69 = vector.shape_cast %68 : vector<1x1x32xf32> to vector<1x32xf32>
    %70 = vector.broadcast %69 : vector<1x32xf32> to vector<16x32xf32>
    %71 = arith.mulf %67, %70 : vector<16x32xf32>
    %72 = arith.addf %44, %71 : vector<16x32xf32>
    %c32 = arith.constant 32 : index
    %c0_31 = arith.constant 0 : index
    %73 = vector.load %arg8[%c32, %c0_31] : memref<128x128xf32, #tpu.memory_space<vmem>>, vector<16x128xf32>
    %74 = arith.truncf %67 : vector<16x32xf32> to vector<16x32xbf16>
    %c0_32 = arith.constant 0 : index
    %c0_33 = arith.constant 0 : index
    %75 = vector.load %arg3[%c0_32, %c0_33] : memref<32x128xbf16, #tpu.memory_space<vmem>>, vector<32x128xbf16>
    %cst_34 = arith.constant dense<0.000000e+00> : vector<16x128xf32>
    %76 = tpu.matmul %74, %75, %cst_34 {dimension_numbers = #tpu.dot_dimension_numbers<[1], [0], [0], [1], [0, 0, 1, 1], [], []>} : vector<16x32xbf16>, vector<32x128xbf16>, vector<16x128xf32> -> vector<16x128xf32>
    %77 = arith.addf %73, %76 : vector<16x128xf32>
    %cst_35 = arith.constant 5.000000e-01 : f32
    %78 = vector.broadcast %cst_35 : f32 to vector<16x128xf32>
    %79 = arith.mulf %78, %77 : vector<16x128xf32>
    %80 = arith.select %13, %77, %79 : vector<16x128xi1>, vector<16x128xf32>
    %81 = math.tanh %80 : vector<16x128xf32>
    %cst_36 = arith.constant 5.000000e-01 : f32
    %82 = vector.broadcast %cst_36 : f32 to vector<16x128xf32>
    %83 = arith.mulf %82, %81 : vector<16x128xf32>
    %cst_37 = arith.constant 5.000000e-01 : f32
    %84 = vector.broadcast %cst_37 : f32 to vector<16x128xf32>
    %85 = arith.addf %83, %84 : vector<16x128xf32>
    %86 = arith.select %13, %81, %85 : vector<16x128xi1>, vector<16x128xf32>
    %87 = vector.extract_strided_slice %86 {offsets = [0, 0], sizes = [16, 32], strides = [1, 1]} : vector<16x128xf32> to vector<16x32xf32>
    %88 = vector.extract_strided_slice %86 {offsets = [0, 32], sizes = [16, 32], strides = [1, 1]} : vector<16x128xf32> to vector<16x32xf32>
    %89 = vector.extract_strided_slice %86 {offsets = [0, 64], sizes = [16, 32], strides = [1, 1]} : vector<16x128xf32> to vector<16x32xf32>
    %90 = vector.extract_strided_slice %86 {offsets = [0, 96], sizes = [16, 32], strides = [1, 1]} : vector<16x128xf32> to vector<16x32xf32>
    %91 = arith.mulf %88, %65 : vector<16x32xf32>
    %92 = arith.mulf %87, %89 : vector<16x32xf32>
    %93 = arith.addf %91, %92 : vector<16x32xf32>
    %94 = math.tanh %93 : vector<16x32xf32>
    %95 = arith.mulf %90, %94 : vector<16x32xf32>
    %c2 = arith.constant 2 : index
    %c0_38 = arith.constant 0 : index
    %c0_39 = arith.constant 0 : index
    %96 = vector.load %arg5[%c2, %c0_38, %c0_39] : memref<8x1x32xf32, #tpu.memory_space<vmem>>, vector<1x1x32xf32>
    %97 = vector.shape_cast %96 : vector<1x1x32xf32> to vector<1x32xf32>
    %98 = vector.broadcast %97 : vector<1x32xf32> to vector<16x32xf32>
    %99 = arith.mulf %95, %98 : vector<16x32xf32>
    %100 = arith.addf %72, %99 : vector<16x32xf32>
    %c48 = arith.constant 48 : index
    %c0_40 = arith.constant 0 : index
    %101 = vector.load %arg8[%c48, %c0_40] : memref<128x128xf32, #tpu.memory_space<vmem>>, vector<16x128xf32>
    %102 = arith.truncf %95 : vector<16x32xf32> to vector<16x32xbf16>
    %c0_41 = arith.constant 0 : index
    %c0_42 = arith.constant 0 : index
    %103 = vector.load %arg3[%c0_41, %c0_42] : memref<32x128xbf16, #tpu.memory_space<vmem>>, vector<32x128xbf16>
    %cst_43 = arith.constant dense<0.000000e+00> : vector<16x128xf32>
    %104 = tpu.matmul %102, %103, %cst_43 {dimension_numbers = #tpu.dot_dimension_numbers<[1], [0], [0], [1], [0, 0, 1, 1], [], []>} : vector<16x32xbf16>, vector<32x128xbf16>, vector<16x128xf32> -> vector<16x128xf32>
    %105 = arith.addf %101, %104 : vector<16x128xf32>
    %cst_44 = arith.constant 5.000000e-01 : f32
    %106 = vector.broadcast %cst_44 : f32 to vector<16x128xf32>
    %107 = arith.mulf %106, %105 : vector<16x128xf32>
    %108 = arith.select %13, %105, %107 : vector<16x128xi1>, vector<16x128xf32>
    %109 = math.tanh %108 : vector<16x128xf32>
    %cst_45 = arith.constant 5.000000e-01 : f32
    %110 = vector.broadcast %cst_45 : f32 to vector<16x128xf32>
    %111 = arith.mulf %110, %109 : vector<16x128xf32>
    %cst_46 = arith.constant 5.000000e-01 : f32
    %112 = vector.broadcast %cst_46 : f32 to vector<16x128xf32>
    %113 = arith.addf %111, %112 : vector<16x128xf32>
    %114 = arith.select %13, %109, %113 : vector<16x128xi1>, vector<16x128xf32>
    %115 = vector.extract_strided_slice %114 {offsets = [0, 0], sizes = [16, 32], strides = [1, 1]} : vector<16x128xf32> to vector<16x32xf32>
    %116 = vector.extract_strided_slice %114 {offsets = [0, 32], sizes = [16, 32], strides = [1, 1]} : vector<16x128xf32> to vector<16x32xf32>
    %117 = vector.extract_strided_slice %114 {offsets = [0, 64], sizes = [16, 32], strides = [1, 1]} : vector<16x128xf32> to vector<16x32xf32>
    %118 = vector.extract_strided_slice %114 {offsets = [0, 96], sizes = [16, 32], strides = [1, 1]} : vector<16x128xf32> to vector<16x32xf32>
    %119 = arith.mulf %116, %93 : vector<16x32xf32>
    %120 = arith.mulf %115, %117 : vector<16x32xf32>
    %121 = arith.addf %119, %120 : vector<16x32xf32>
    %122 = math.tanh %121 : vector<16x32xf32>
    %123 = arith.mulf %118, %122 : vector<16x32xf32>
    %c3 = arith.constant 3 : index
    %c0_47 = arith.constant 0 : index
    %c0_48 = arith.constant 0 : index
    %124 = vector.load %arg5[%c3, %c0_47, %c0_48] : memref<8x1x32xf32, #tpu.memory_space<vmem>>, vector<1x1x32xf32>
    %125 = vector.shape_cast %124 : vector<1x1x32xf32> to vector<1x32xf32>
    %126 = vector.broadcast %125 : vector<1x32xf32> to vector<16x32xf32>
    %127 = arith.mulf %123, %126 : vector<16x32xf32>
    %128 = arith.addf %100, %127 : vector<16x32xf32>
    %c64 = arith.constant 64 : index
    %c0_49 = arith.constant 0 : index
    %129 = vector.load %arg8[%c64, %c0_49] : memref<128x128xf32, #tpu.memory_space<vmem>>, vector<16x128xf32>
    %130 = arith.truncf %123 : vector<16x32xf32> to vector<16x32xbf16>
    %c0_50 = arith.constant 0 : index
    %c0_51 = arith.constant 0 : index
    %131 = vector.load %arg3[%c0_50, %c0_51] : memref<32x128xbf16, #tpu.memory_space<vmem>>, vector<32x128xbf16>
    %cst_52 = arith.constant dense<0.000000e+00> : vector<16x128xf32>
    %132 = tpu.matmul %130, %131, %cst_52 {dimension_numbers = #tpu.dot_dimension_numbers<[1], [0], [0], [1], [0, 0, 1, 1], [], []>} : vector<16x32xbf16>, vector<32x128xbf16>, vector<16x128xf32> -> vector<16x128xf32>
    %133 = arith.addf %129, %132 : vector<16x128xf32>
    %cst_53 = arith.constant 5.000000e-01 : f32
    %134 = vector.broadcast %cst_53 : f32 to vector<16x128xf32>
    %135 = arith.mulf %134, %133 : vector<16x128xf32>
    %136 = arith.select %13, %133, %135 : vector<16x128xi1>, vector<16x128xf32>
    %137 = math.tanh %136 : vector<16x128xf32>
    %cst_54 = arith.constant 5.000000e-01 : f32
    %138 = vector.broadcast %cst_54 : f32 to vector<16x128xf32>
    %139 = arith.mulf %138, %137 : vector<16x128xf32>
    %cst_55 = arith.constant 5.000000e-01 : f32
    %140 = vector.broadcast %cst_55 : f32 to vector<16x128xf32>
    %141 = arith.addf %139, %140 : vector<16x128xf32>
    %142 = arith.select %13, %137, %141 : vector<16x128xi1>, vector<16x128xf32>
    %143 = vector.extract_strided_slice %142 {offsets = [0, 0], sizes = [16, 32], strides = [1, 1]} : vector<16x128xf32> to vector<16x32xf32>
    %144 = vector.extract_strided_slice %142 {offsets = [0, 32], sizes = [16, 32], strides = [1, 1]} : vector<16x128xf32> to vector<16x32xf32>
    %145 = vector.extract_strided_slice %142 {offsets = [0, 64], sizes = [16, 32], strides = [1, 1]} : vector<16x128xf32> to vector<16x32xf32>
    %146 = vector.extract_strided_slice %142 {offsets = [0, 96], sizes = [16, 32], strides = [1, 1]} : vector<16x128xf32> to vector<16x32xf32>
    %147 = arith.mulf %144, %121 : vector<16x32xf32>
    %148 = arith.mulf %143, %145 : vector<16x32xf32>
    %149 = arith.addf %147, %148 : vector<16x32xf32>
    %150 = math.tanh %149 : vector<16x32xf32>
    %151 = arith.mulf %146, %150 : vector<16x32xf32>
    %c4 = arith.constant 4 : index
    %c0_56 = arith.constant 0 : index
    %c0_57 = arith.constant 0 : index
    %152 = vector.load %arg5[%c4, %c0_56, %c0_57] : memref<8x1x32xf32, #tpu.memory_space<vmem>>, vector<1x1x32xf32>
    %153 = vector.shape_cast %152 : vector<1x1x32xf32> to vector<1x32xf32>
    %154 = vector.broadcast %153 : vector<1x32xf32> to vector<16x32xf32>
    %155 = arith.mulf %151, %154 : vector<16x32xf32>
    %156 = arith.addf %128, %155 : vector<16x32xf32>
    %c80 = arith.constant 80 : index
    %c0_58 = arith.constant 0 : index
    %157 = vector.load %arg8[%c80, %c0_58] : memref<128x128xf32, #tpu.memory_space<vmem>>, vector<16x128xf32>
    %158 = arith.truncf %151 : vector<16x32xf32> to vector<16x32xbf16>
    %c0_59 = arith.constant 0 : index
    %c0_60 = arith.constant 0 : index
    %159 = vector.load %arg3[%c0_59, %c0_60] : memref<32x128xbf16, #tpu.memory_space<vmem>>, vector<32x128xbf16>
    %cst_61 = arith.constant dense<0.000000e+00> : vector<16x128xf32>
    %160 = tpu.matmul %158, %159, %cst_61 {dimension_numbers = #tpu.dot_dimension_numbers<[1], [0], [0], [1], [0, 0, 1, 1], [], []>} : vector<16x32xbf16>, vector<32x128xbf16>, vector<16x128xf32> -> vector<16x128xf32>
    %161 = arith.addf %157, %160 : vector<16x128xf32>
    %cst_62 = arith.constant 5.000000e-01 : f32
    %162 = vector.broadcast %cst_62 : f32 to vector<16x128xf32>
    %163 = arith.mulf %162, %161 : vector<16x128xf32>
    %164 = arith.select %13, %161, %163 : vector<16x128xi1>, vector<16x128xf32>
    %165 = math.tanh %164 : vector<16x128xf32>
    %cst_63 = arith.constant 5.000000e-01 : f32
    %166 = vector.broadcast %cst_63 : f32 to vector<16x128xf32>
    %167 = arith.mulf %166, %165 : vector<16x128xf32>
    %cst_64 = arith.constant 5.000000e-01 : f32
    %168 = vector.broadcast %cst_64 : f32 to vector<16x128xf32>
    %169 = arith.addf %167, %168 : vector<16x128xf32>
    %170 = arith.select %13, %165, %169 : vector<16x128xi1>, vector<16x128xf32>
    %171 = vector.extract_strided_slice %170 {offsets = [0, 0], sizes = [16, 32], strides = [1, 1]} : vector<16x128xf32> to vector<16x32xf32>
    %172 = vector.extract_strided_slice %170 {offsets = [0, 32], sizes = [16, 32], strides = [1, 1]} : vector<16x128xf32> to vector<16x32xf32>
    %173 = vector.extract_strided_slice %170 {offsets = [0, 64], sizes = [16, 32], strides = [1, 1]} : vector<16x128xf32> to vector<16x32xf32>
    %174 = vector.extract_strided_slice %170 {offsets = [0, 96], sizes = [16, 32], strides = [1, 1]} : vector<16x128xf32> to vector<16x32xf32>
    %175 = arith.mulf %172, %149 : vector<16x32xf32>
    %176 = arith.mulf %171, %173 : vector<16x32xf32>
    %177 = arith.addf %175, %176 : vector<16x32xf32>
    %178 = math.tanh %177 : vector<16x32xf32>
    %179 = arith.mulf %174, %178 : vector<16x32xf32>
    %c5 = arith.constant 5 : index
    %c0_65 = arith.constant 0 : index
    %c0_66 = arith.constant 0 : index
    %180 = vector.load %arg5[%c5, %c0_65, %c0_66] : memref<8x1x32xf32, #tpu.memory_space<vmem>>, vector<1x1x32xf32>
    %181 = vector.shape_cast %180 : vector<1x1x32xf32> to vector<1x32xf32>
    %182 = vector.broadcast %181 : vector<1x32xf32> to vector<16x32xf32>
    %183 = arith.mulf %179, %182 : vector<16x32xf32>
    %184 = arith.addf %156, %183 : vector<16x32xf32>
    %c96 = arith.constant 96 : index
    %c0_67 = arith.constant 0 : index
    %185 = vector.load %arg8[%c96, %c0_67] : memref<128x128xf32, #tpu.memory_space<vmem>>, vector<16x128xf32>
    %186 = arith.truncf %179 : vector<16x32xf32> to vector<16x32xbf16>
    %c0_68 = arith.constant 0 : index
    %c0_69 = arith.constant 0 : index
    %187 = vector.load %arg3[%c0_68, %c0_69] : memref<32x128xbf16, #tpu.memory_space<vmem>>, vector<32x128xbf16>
    %cst_70 = arith.constant dense<0.000000e+00> : vector<16x128xf32>
    %188 = tpu.matmul %186, %187, %cst_70 {dimension_numbers = #tpu.dot_dimension_numbers<[1], [0], [0], [1], [0, 0, 1, 1], [], []>} : vector<16x32xbf16>, vector<32x128xbf16>, vector<16x128xf32> -> vector<16x128xf32>
    %189 = arith.addf %185, %188 : vector<16x128xf32>
    %cst_71 = arith.constant 5.000000e-01 : f32
    %190 = vector.broadcast %cst_71 : f32 to vector<16x128xf32>
    %191 = arith.mulf %190, %189 : vector<16x128xf32>
    %192 = arith.select %13, %189, %191 : vector<16x128xi1>, vector<16x128xf32>
    %193 = math.tanh %192 : vector<16x128xf32>
    %cst_72 = arith.constant 5.000000e-01 : f32
    %194 = vector.broadcast %cst_72 : f32 to vector<16x128xf32>
    %195 = arith.mulf %194, %193 : vector<16x128xf32>
    %cst_73 = arith.constant 5.000000e-01 : f32
    %196 = vector.broadcast %cst_73 : f32 to vector<16x128xf32>
    %197 = arith.addf %195, %196 : vector<16x128xf32>
    %198 = arith.select %13, %193, %197 : vector<16x128xi1>, vector<16x128xf32>
    %199 = vector.extract_strided_slice %198 {offsets = [0, 0], sizes = [16, 32], strides = [1, 1]} : vector<16x128xf32> to vector<16x32xf32>
    %200 = vector.extract_strided_slice %198 {offsets = [0, 32], sizes = [16, 32], strides = [1, 1]} : vector<16x128xf32> to vector<16x32xf32>
    %201 = vector.extract_strided_slice %198 {offsets = [0, 64], sizes = [16, 32], strides = [1, 1]} : vector<16x128xf32> to vector<16x32xf32>
    %202 = vector.extract_strided_slice %198 {offsets = [0, 96], sizes = [16, 32], strides = [1, 1]} : vector<16x128xf32> to vector<16x32xf32>
    %203 = arith.mulf %200, %177 : vector<16x32xf32>
    %204 = arith.mulf %199, %201 : vector<16x32xf32>
    %205 = arith.addf %203, %204 : vector<16x32xf32>
    %206 = math.tanh %205 : vector<16x32xf32>
    %207 = arith.mulf %202, %206 : vector<16x32xf32>
    %c6 = arith.constant 6 : index
    %c0_74 = arith.constant 0 : index
    %c0_75 = arith.constant 0 : index
    %208 = vector.load %arg5[%c6, %c0_74, %c0_75] : memref<8x1x32xf32, #tpu.memory_space<vmem>>, vector<1x1x32xf32>
    %209 = vector.shape_cast %208 : vector<1x1x32xf32> to vector<1x32xf32>
    %210 = vector.broadcast %209 : vector<1x32xf32> to vector<16x32xf32>
    %211 = arith.mulf %207, %210 : vector<16x32xf32>
    %212 = arith.addf %184, %211 : vector<16x32xf32>
    %c112 = arith.constant 112 : index
    %c0_76 = arith.constant 0 : index
    %213 = vector.load %arg8[%c112, %c0_76] : memref<128x128xf32, #tpu.memory_space<vmem>>, vector<16x128xf32>
    %214 = arith.truncf %207 : vector<16x32xf32> to vector<16x32xbf16>
    %c0_77 = arith.constant 0 : index
    %c0_78 = arith.constant 0 : index
    %215 = vector.load %arg3[%c0_77, %c0_78] : memref<32x128xbf16, #tpu.memory_space<vmem>>, vector<32x128xbf16>
    %cst_79 = arith.constant dense<0.000000e+00> : vector<16x128xf32>
    %216 = tpu.matmul %214, %215, %cst_79 {dimension_numbers = #tpu.dot_dimension_numbers<[1], [0], [0], [1], [0, 0, 1, 1], [], []>} : vector<16x32xbf16>, vector<32x128xbf16>, vector<16x128xf32> -> vector<16x128xf32>
    %217 = arith.addf %213, %216 : vector<16x128xf32>
    %cst_80 = arith.constant 5.000000e-01 : f32
    %218 = vector.broadcast %cst_80 : f32 to vector<16x128xf32>
    %219 = arith.mulf %218, %217 : vector<16x128xf32>
    %220 = arith.select %13, %217, %219 : vector<16x128xi1>, vector<16x128xf32>
    %221 = math.tanh %220 : vector<16x128xf32>
    %cst_81 = arith.constant 5.000000e-01 : f32
    %222 = vector.broadcast %cst_81 : f32 to vector<16x128xf32>
    %223 = arith.mulf %222, %221 : vector<16x128xf32>
    %cst_82 = arith.constant 5.000000e-01 : f32
    %224 = vector.broadcast %cst_82 : f32 to vector<16x128xf32>
    %225 = arith.addf %223, %224 : vector<16x128xf32>
    %226 = arith.select %13, %221, %225 : vector<16x128xi1>, vector<16x128xf32>
    %227 = vector.extract_strided_slice %226 {offsets = [0, 0], sizes = [16, 32], strides = [1, 1]} : vector<16x128xf32> to vector<16x32xf32>
    %228 = vector.extract_strided_slice %226 {offsets = [0, 32], sizes = [16, 32], strides = [1, 1]} : vector<16x128xf32> to vector<16x32xf32>
    %229 = vector.extract_strided_slice %226 {offsets = [0, 64], sizes = [16, 32], strides = [1, 1]} : vector<16x128xf32> to vector<16x32xf32>
    %230 = vector.extract_strided_slice %226 {offsets = [0, 96], sizes = [16, 32], strides = [1, 1]} : vector<16x128xf32> to vector<16x32xf32>
    %231 = arith.mulf %228, %205 : vector<16x32xf32>
    %232 = arith.mulf %227, %229 : vector<16x32xf32>
    %233 = arith.addf %231, %232 : vector<16x32xf32>
    %234 = math.tanh %233 : vector<16x32xf32>
    %235 = arith.mulf %230, %234 : vector<16x32xf32>
    %c7 = arith.constant 7 : index
    %c0_83 = arith.constant 0 : index
    %c0_84 = arith.constant 0 : index
    %236 = vector.load %arg5[%c7, %c0_83, %c0_84] : memref<8x1x32xf32, #tpu.memory_space<vmem>>, vector<1x1x32xf32>
    %237 = vector.shape_cast %236 : vector<1x1x32xf32> to vector<1x32xf32>
    %238 = vector.broadcast %237 : vector<1x32xf32> to vector<16x32xf32>
    %239 = arith.mulf %235, %238 : vector<16x32xf32>
    %240 = arith.addf %212, %239 : vector<16x32xf32>
    %cst_85 = arith.constant 1.000000e+00 : f32
    %241 = vector.broadcast %cst_85 : f32 to vector<1x32xf32>
    %cst_86 = arith.constant dense<0.000000e+00> : vector<1x16xf32>
    %242 = tpu.matmul %241, %240, %cst_86 {dimension_numbers = #tpu.dot_dimension_numbers<[1], [1], [0], [0], [0, 0, 1, 0], [], []>} : vector<1x32xf32>, vector<16x32xf32>, vector<1x16xf32> -> vector<1x16xf32>
    %c0_87 = arith.constant 0 : index
    %c0_88 = arith.constant 0 : index
    %243 = vector.load %arg6[%c0_87, %c0_88] : memref<1x1xf32, #tpu.memory_space<vmem>>, vector<1x1xf32>
    %244 = vector.broadcast %243 : vector<1x1xf32> to vector<1x16xf32>
    %245 = arith.addf %242, %244 : vector<1x16xf32>
    %246 = arith.negf %245 : vector<1x16xf32>
    %247 = math.exp %246 : vector<1x16xf32>
    %cst_89 = arith.constant 1.000000e+00 : f32
    %248 = vector.broadcast %cst_89 : f32 to vector<1x16xf32>
    %249 = arith.addf %248, %247 : vector<1x16xf32>
    %250 = arith.divf %248, %249 : vector<1x16xf32>
    %c0_90 = arith.constant 0 : index
    %c0_91 = arith.constant 0 : index
    %251 = vector.load %arg7[%c0_90, %c0_91] : memref<1x16xf32, #tpu.memory_space<vmem>>, vector<1x16xf32>
    tpu.vector_store %arg7[%c0_90, %c0_91], %250 {strides = array<i32>} : memref<1x16xf32, #tpu.memory_space<vmem>>, vector<1x16xf32>,
    return
  }
  func.func @transform_0(%arg0: i32) -> (i32, i32, i32) {
    %c0_i32 = arith.constant 0 : i32
    %c0_i32_0 = arith.constant 0 : i32
    %c0_i32_1 = arith.constant 0 : i32
    return %c0_i32, %arg0, %c0_i32_0 : i32, i32, i32
  }
  func.func @transform_1(%arg0: i32) -> (i32, i32) {
    %c0_i32 = arith.constant 0 : i32
    %c0_i32_0 = arith.constant 0 : i32
    %c0_i32_1 = arith.constant 0 : i32
    return %c0_i32, %c0_i32_0 : i32, i32
  }
  func.func @transform_2(%arg0: i32) -> (i32, i32) {
    %c0_i32 = arith.constant 0 : i32
    %c0_i32_0 = arith.constant 0 : i32
    %c0_i32_1 = arith.constant 0 : i32
    return %c0_i32, %c0_i32_0 : i32, i32
  }
  func.func @transform_3(%arg0: i32) -> (i32, i32) {
    %c0_i32 = arith.constant 0 : i32
    %c0_i32_0 = arith.constant 0 : i32
    %c0_i32_1 = arith.constant 0 : i32
    return %c0_i32, %c0_i32_0 : i32, i32
  }
  func.func @transform_4(%arg0: i32) -> (i32, i32, i32) {
    %c0_i32 = arith.constant 0 : i32
    %c0_i32_0 = arith.constant 0 : i32
    %c0_i32_1 = arith.constant 0 : i32
    %c0_i32_2 = arith.constant 0 : i32
    return %c0_i32, %c0_i32_0, %c0_i32_1 : i32, i32, i32
  }
  func.func @transform_5(%arg0: i32) -> (i32, i32) {
    %c0_i32 = arith.constant 0 : i32
    %c0_i32_0 = arith.constant 0 : i32
    %c0_i32_1 = arith.constant 0 : i32
    return %c0_i32, %c0_i32_0 : i32, i32
  }
  func.func @transform_6(%arg0: i32) -> (i32, i32) {
    %c0_i32 = arith.constant 0 : i32
    %c0_i32_0 = arith.constant 0 : i32
    return %arg0, %c0_i32 : i32, i32
  }
}

</mosaic_0001>

<llo_original>
// kernel: tpu_custom_call.1
$region0: #{tpu_custom_call.1}
  #allocation0 [shape = 'u32[]', space=smem, size = 0x4, offset = 0x4, fixed_abs, tag = 'smem constant byte address 0x4 - core index']
  #allocation1 [shape = 'u32[144,128]{1,0:T(1,128)}', space=vmem, size = 0x12000, scoped, tag = 'internal scratch']
  #allocation2 [shape = 'f32[128,128]{1,0:T(8,128)}', space=vmem, size = 0x10000, scoped, tag = 'scratch operand']
  #allocation3 [shape = 'f32[1,1]{1,0:T(1,128)S(1)}', space=vmem, size = 0x200, scoped, tag = 'scoped memory for tpu_custom_call.1']
  %s0 = inlined_call_operand.hbm [shape: bf16[8,16,16], index: 0, kind: input, shape index: {}]
  %s1 = inlined_call_operand.hbm [shape: bf16[16,128], index: 1, kind: input, shape index: {}]
  %s2 = inlined_call_operand.hbm [shape: bf16[32,128], index: 2, kind: input, shape index: {}]
  %s3 = inlined_call_operand.vmem [shape: f32[1,128], index: 3, kind: input, shape index: {}]
  %s4 = inlined_call_operand.vmem [shape: f32[8,1,32], index: 4, kind: input, shape index: {}]
  %s5 = inlined_call_operand.<no memory space> [shape: f32[1,1], index: 5, kind: input, shape index: {}]
  %s6 = inlined_call_operand.hbm [shape: f32[1,16], index: 6, kind: output, shape index: {}]
  %s7 = sld [smem:[#allocation0]]
  $region46: #{tpu_custom_call.1} parent=0
    _
  %s9 = ssub.s32 1, %s7
  %s10 = scalar_select 0, %s9, %s7
  %v11 = vstv %s5
  %12 = vst [vmem:[#allocation3] sm:$0x1] %v11
  $region1: #{tpu_custom_call.1} parent=0
    #allocation4 [shape = 'u8[32768]{0}', space=vmem, size = 0x8000, scoped, tag = 'input window, operand 0, single buffered']
    #allocation5 [shape = 's32[1]{0}', space=sflag, size = 0x4, scoped, tag = 'scoped memory for tpu_custom_call.1']
    #allocation6 [shape = 's32[1]{0}', space=sflag, size = 0x4, scoped, tag = 'scoped memory for tpu_custom_call.1']
    #allocation7 [shape = 'u8[4096]{0}', space=vmem, size = 0x1000, scoped, tag = 'input window, operand 1, single buffered']
    #allocation8 [shape = 's32[1]{0}', space=sflag, size = 0x4, scoped, tag = 'scoped memory for tpu_custom_call.1']
    #allocation9 [shape = 'u8[8192]{0}', space=vmem, size = 0x2000, scoped, tag = 'input window, operand 2, single buffered']
    #allocation10 [shape = 'u8[512]{0}', space=vmem, size = 0x400, scoped, tag = 'output window, operand 0, single buffered']
    %13 = vsyncpa [#allocation5], 0
    %14 = vsyncpa [#allocation8], 0
    %15 = vsyncpa [#allocation6], 0
    // Predicated region
    $region2: #{tpu_custom_call.1} parent=1 // pred_check
      _
    $region3: #{tpu_custom_call.1} parent=1 // pred_check_branch
      %17 = sbr.rel (0) target = $region5
    $region4: #{tpu_custom_call.1} parent=1 // pred_region
      %s19 = ssub.s32 1024, 1024
      %20 = vsyncadd [#allocation5], %s19
      %s21 = sshll.u32 [#allocation4], 4
      %s22 = int_to_ptr.vmem [resolvable:$true] %s21
      %27 = dma.hbm_to_vmem [thread:$0]  %s0, 1024, %s22, [#allocation5], 64, 64, 4
    $region5: #{tpu_custom_call.1} parent=1 // pred_fallthru
      _
    // Predicated region
    $region6: #{tpu_custom_call.1} parent=1 // pred_check
      _
    $region7: #{tpu_custom_call.1} parent=1 // pred_check_branch
      %29 = sbr.rel (0) target = $region9
    $region8: #{tpu_custom_call.1} parent=1 // pred_region
      %s31 = ssub.s32 128, 128
      %32 = vsyncadd [#allocation8], %s31
      %s33 = sshll.u32 [#allocation7], 4
      %s34 = int_to_ptr.vmem [resolvable:$true] %s33
      %39 = dma.hbm_to_vmem [thread:$0]  %s1, 128, %s34, [#allocation8], 64, 64, 4
    $region9: #{tpu_custom_call.1} parent=1 // pred_fallthru
      _
    // Predicated region
    $region10: #{tpu_custom_call.1} parent=1 // pred_check
      _
    $region11: #{tpu_custom_call.1} parent=1 // pred_check_branch
      %41 = sbr.rel (0) target = $region13
    $region12: #{tpu_custom_call.1} parent=1 // pred_region
      %s43 = ssub.s32 256, 256
      %44 = vsyncadd [#allocation8], %s43
      %s45 = sshll.u32 [#allocation9], 4
      %s46 = int_to_ptr.vmem [resolvable:$true] %s45
      %51 = dma.hbm_to_vmem [thread:$0]  %s2, 256, %s46, [#allocation8], 64, 64, 4
    $region13: #{tpu_custom_call.1} parent=1 // pred_fallthru
      _
    // Predicated region
    $region14: #{tpu_custom_call.1} parent=1 // pred_check
      _
    $region15: #{tpu_custom_call.1} parent=1 // pred_check_branch
      %53 = sbr.rel (0) target = $region17
    $region16: #{tpu_custom_call.1} parent=1 // pred_region
      _
    $region17: #{tpu_custom_call.1} parent=1 // pred_fallthru
      _
    // Predicated region
    $region18: #{tpu_custom_call.1} parent=1 // pred_check
      _
    $region19: #{tpu_custom_call.1} parent=1 // pred_check_branch
      %55 = sbr.rel (0) target = $region21
    $region20: #{tpu_custom_call.1} parent=1 // pred_region
      _
    $region21: #{tpu_custom_call.1} parent=1 // pred_fallthru
      _
    // Predicated region
    $region22: #{tpu_custom_call.1} parent=1 // pred_check
      _
    $region23: #{tpu_custom_call.1} parent=1 // pred_check_branch
      %57 = sbr.rel (0) target = $region25
    $region24: #{tpu_custom_call.1} parent=1 // pred_region
      _
    $region25: #{tpu_custom_call.1} parent=1 // pred_fallthru
      _
    // Predicated region
    $region26: #{tpu_custom_call.1} parent=1 // pred_check
      _
    $region27: #{tpu_custom_call.1} parent=1 // pred_check_branch
      %59 = sbr.rel (0) target = $region29
    $region28: #{tpu_custom_call.1} parent=1 // pred_region
      %60 = dma.done [#allocation5], 1024
    $region29: #{tpu_custom_call.1} parent=1 // pred_fallthru
      _
    // Predicated region
    $region30: #{tpu_custom_call.1} parent=1 // pred_check
      _
    $region31: #{tpu_custom_call.1} parent=1 // pred_check_branch
      %62 = sbr.rel (0) target = $region33
    $region32: #{tpu_custom_call.1} parent=1 // pred_region
      %63 = dma.done [#allocation8], 128
    $region33: #{tpu_custom_call.1} parent=1 // pred_fallthru
      _
    // Predicated region
    $region34: #{tpu_custom_call.1} parent=1 // pred_check
      _
    $region35: #{tpu_custom_call.1} parent=1 // pred_check_branch
      %65 = sbr.rel (0) target = $region37
    $region36: #{tpu_custom_call.1} parent=1 // pred_region
      %66 = dma.done [#allocation8], 256
    $region37: #{tpu_custom_call.1} parent=1 // pred_fallthru
      _
    %v68 = vld [vmem:[#allocation4] sm:$0xf]
    %v69 = vld [vmem:[#allocation4 + $0x4] sm:$0xf]
    %v70 = vld [vmem:[#allocation4 + $0x8] sm:$0xf]
    %v71 = vld [vmem:[#allocation4 + $0xc] sm:$0xf]
    %v72 = vld [vmem:[#allocation4 + $0x10] sm:$0xf]
    %v73 = vld [vmem:[#allocation4 + $0x14] sm:$0xf]
    %v74 = vld [vmem:[#allocation4 + $0x18] sm:$0xf]
    %v75 = vld [vmem:[#allocation4 + $0x1c] sm:$0xf]
    %v76 = vld [vmem:[#allocation4 + $0x20] sm:$0xf]
    %v77 = vld [vmem:[#allocation4 + $0x24] sm:$0xf]
    %v78 = vld [vmem:[#allocation4 + $0x28] sm:$0xf]
    %v79 = vld [vmem:[#allocation4 + $0x2c] sm:$0xf]
    %v80 = vld [vmem:[#allocation4 + $0x30] sm:$0xf]
    %v81 = vld [vmem:[#allocation4 + $0x34] sm:$0xf]
    %v82 = vld [vmem:[#allocation4 + $0x38] sm:$0xf]
    %v83 = vld [vmem:[#allocation4 + $0x3c] sm:$0xf]
    %v84 = vld [vmem:[#allocation7] sm:$0xf]
    %v85 = vld [vmem:[#allocation7 + $0x4] sm:$0xf]
    %v86 = vld [vmem:[%s3] sm:$0x1]
    %v88 = vlaneseq
    %v89 = vshrl.u32 %v88, 7
    %v90 = vsub.s32 0, %v89
    %v91 = vrot.slane %v86, %v90
    %v109 = vunpack.c.l.b16 %v68
    %v110 = vunpack.c.l.b16 %v69
    %v111 = vunpack.c.l.b16 %v70
    %v112 = vunpack.c.l.b16 %v71
    %v113 = vunpack.c.l.b16 %v72
    %v114 = vunpack.c.l.b16 %v73
    %v115 = vunpack.c.l.b16 %v74
    %v116 = vunpack.c.l.b16 %v75
    %v117 = vunpack.c.l.b16 %v76
    %v118 = vunpack.c.l.b16 %v77
    %v119 = vunpack.c.l.b16 %v78
    %v120 = vunpack.c.l.b16 %v79
    %v121 = vunpack.c.l.b16 %v80
    %v122 = vunpack.c.l.b16 %v81
    %v123 = vunpack.c.l.b16 %v82
    %v124 = vunpack.c.l.b16 %v83
    %v125 = vpack.c.b16 %v110, %v109
    %v126 = vpack.c.b16 %v112, %v111
    %v127 = vpack.c.b16 %v114, %v113
    %v128 = vpack.c.b16 %v116, %v115
    %v129 = vpack.c.b16 %v118, %v117
    %v130 = vpack.c.b16 %v120, %v119
    %v131 = vpack.c.b16 %v122, %v121
    %v132 = vpack.c.b16 %v124, %v123
    %v135 = vunpack.c.l.b16 %v84
    %v136 = vunpack.c.l.b16 %v85
    %v137 = vpack.c.b16 %v136, %v135
    %vm139 = vcmask 130048
    %v141 = vsel %vm139, %v125, 0
    %v144 = vsel %vm139, %v126, 0
    %v147 = vsel %vm139, %v127, 0
    %v150 = vsel %vm139, %v128, 0
    %v153 = vsel %vm139, %v129, 0
    %v156 = vsel %vm139, %v130, 0
    %v159 = vsel %vm139, %v131, 0
    %v162 = vsel %vm139, %v132, 0
    %164 = vmatprep.subr.bf16.mxu0 0
    %165 = vmatpush1.bf16.msra.mxu0 %v137
    %166 = vmatprep.subr.bf16.mxu0 0
    %167 = vmatpush1.bf16.msra.mxu0 0
    %168 = vmatprep.subr.bf16.mxu0 0
    %169 = vmatpush1.bf16.msra.mxu0 0
    %170 = vmatprep.subr.bf16.mxu0 0
    %171 = vmatpush1.bf16.msra.mxu0 0
    %172 = vmatprep.subr.bf16.mxu0 0
    %173 = vmatpush1.bf16.msra.mxu0 0
    %174 = vmatprep.subr.bf16.mxu0 0
    %175 = vmatpush1.bf16.msra.mxu0 0
    %176 = vmatprep.subr.bf16.mxu0 0
    %177 = vmatpush1.bf16.msra.mxu0 0
    %178 = vmatprep.subr.bf16.mxu0 0
    %179 = vmatpush1.bf16.msra.mxu0 0
    %180 = vmatprep.subr.bf16.mxu0 0
    %181 = vmatpush1.bf16.msra.mxu0 0
    %182 = vmatprep.subr.bf16.mxu0 0
    %183 = vmatpush1.bf16.msra.mxu0 0
    %184 = vmatprep.subr.bf16.mxu0 0
    %185 = vmatpush1.bf16.msra.mxu0 0
    %186 = vmatprep.subr.bf16.mxu0 0
    %187 = vmatpush1.bf16.msra.mxu0 0
    %188 = vmatprep.subr.bf16.mxu0 0
    %189 = vmatpush1.bf16.msra.mxu0 0
    %190 = vmatprep.subr.bf16.mxu0 0
    %191 = vmatpush1.bf16.msra.mxu0 0
    %192 = vmatprep.subr.bf16.mxu0 0
    %193 = vmatpush1.bf16.msra.mxu0 0
    %194 = vmatprep.subr.bf16.mxu0 0
    %195 = vmatpush1.bf16.msra.mxu0 0
    %196 = vmatprep.mubr.bf16.mxu0 0
    %197 = vmatmul.mubr.bf16.gmra.mrb[0].mxu0 %v141
    %v198 = vpop.f32.mrb[0].mxu0
    %v199 = vadd.f32 %v91, %v198
    %v200 = vpop.f32.mrb[0].mxu0
    %v201 = vpop.f32.mrb[0].mxu0
    %v202 = vadd.f32 %v91, %v201
    %v203 = vpop.f32.mrb[0].mxu0
    %204 = vmatprep.mubr.bf16.mxu0 0
    %205 = vmatmul.mubr.bf16.gmra.mrb[0].mxu0 %v144
    %v206 = vpop.f32.mrb[0].mxu0
    %v207 = vadd.f32 %v91, %v206
    %v208 = vpop.f32.mrb[0].mxu0
    %v209 = vpop.f32.mrb[0].mxu0
    %v210 = vadd.f32 %v91, %v209
    %v211 = vpop.f32.mrb[0].mxu0
    %212 = vmatprep.mubr.bf16.mxu0 0
    %213 = vmatmul.mubr.bf16.gmra.mrb[0].mxu0 %v147
    %v214 = vpop.f32.mrb[0].mxu0
    %v215 = vadd.f32 %v91, %v214
    %v216 = vpop.f32.mrb[0].mxu0
    %v217 = vpop.f32.mrb[0].mxu0
    %v218 = vadd.f32 %v91, %v217
    %v219 = vpop.f32.mrb[0].mxu0
    %220 = vmatprep.mubr.bf16.mxu0 0
    %221 = vmatmul.mubr.bf16.gmra.mrb[0].mxu0 %v150
    %v222 = vpop.f32.mrb[0].mxu0
    %v223 = vadd.f32 %v91, %v222
    %v224 = vpop.f32.mrb[0].mxu0
    %v225 = vpop.f32.mrb[0].mxu0
    %v226 = vadd.f32 %v91, %v225
    %v227 = vpop.f32.mrb[0].mxu0
    %228 = vmatprep.mubr.bf16.mxu0 0
    %229 = vmatmul.mubr.bf16.gmra.mrb[0].mxu0 %v153
    %v230 = vpop.f32.mrb[0].mxu0
    %v231 = vadd.f32 %v91, %v230
    %v232 = vpop.f32.mrb[0].mxu0
    %v233 = vpop.f32.mrb[0].mxu0
    %v234 = vadd.f32 %v91, %v233
    %v235 = vpop.f32.mrb[0].mxu0
    %236 = vmatprep.mubr.bf16.mxu0 0
    %237 = vmatmul.mubr.bf16.gmra.mrb[0].mxu0 %v156
    %v238 = vpop.f32.mrb[0].mxu0
    %v239 = vadd.f32 %v91, %v238
    %v240 = vpop.f32.mrb[0].mxu0
    %v241 = vpop.f32.mrb[0].mxu0
    %v242 = vadd.f32 %v91, %v241
    %v243 = vpop.f32.mrb[0].mxu0
    %244 = vmatprep.mubr.bf16.mxu0 0
    %245 = vmatmul.mubr.bf16.gmra.mrb[0].mxu0 %v159
    %v246 = vpop.f32.mrb[0].mxu0
    %v247 = vadd.f32 %v91, %v246
    %v248 = vpop.f32.mrb[0].mxu0
    %v249 = vpop.f32.mrb[0].mxu0
    %v250 = vadd.f32 %v91, %v249
    %v251 = vpop.f32.mrb[0].mxu0
    %252 = vmatprep.mubr.bf16.mxu0 0
    %253 = vmatmul.mubr.bf16.gmra.mrb[0].mxu0 %v162
    %v254 = vpop.f32.mrb[0].mxu0
    %v255 = vadd.f32 %v91, %v254
    %v256 = vpop.f32.mrb[0].mxu0
    %v257 = vpop.f32.mrb[0].mxu0
    %v258 = vadd.f32 %v91, %v257
    %v259 = vpop.f32.mrb[0].mxu0
    %260 = vdwg.mxu0
    %261 = vst [vmem:[#allocation2] sm:$0xff] %v199
    %262 = vst [vmem:[#allocation2 + $0x8] sm:$0xff] %v202
    %263 = vst [vmem:[#allocation2 + $0x10] sm:$0xff] %v207
    %264 = vst [vmem:[#allocation2 + $0x18] sm:$0xff] %v210
    %265 = vst [vmem:[#allocation2 + $0x20] sm:$0xff] %v215
    %266 = vst [vmem:[#allocation2 + $0x28] sm:$0xff] %v218
    %267 = vst [vmem:[#allocation2 + $0x30] sm:$0xff] %v223
    %268 = vst [vmem:[#allocation2 + $0x38] sm:$0xff] %v226
    %269 = vst [vmem:[#allocation2 + $0x40] sm:$0xff] %v231
    %270 = vst [vmem:[#allocation2 + $0x48] sm:$0xff] %v234
    %271 = vst [vmem:[#allocation2 + $0x50] sm:$0xff] %v239
    %272 = vst [vmem:[#allocation2 + $0x58] sm:$0xff] %v242
    %273 = vst [vmem:[#allocation2 + $0x60] sm:$0xff] %v247
    %274 = vst [vmem:[#allocation2 + $0x68] sm:$0xff] %v250
    %275 = vst [vmem:[#allocation2 + $0x70] sm:$0xff] %v255
    %276 = vst [vmem:[#allocation2 + $0x78] sm:$0xff] %v258
    %v277 = vlaneseq
    %v278 = vand.u32 %v277, 127
    %vm279 = vcmp.ge.s32.totalorder %v278, 64
    %vm280 = vcmp.lt.s32.totalorder %v278, 96
    %vm281 = vmand %vm279, %vm280
    %v282 = vld [vmem:[#allocation2] sm:$0xff]
    %v283 = vld [vmem:[#allocation2 + $0x8] sm:$0xff]
    %v284 = vld [vmem:[#allocation9] sm:$0xf]
    %v285 = vld [vmem:[#allocation9 + $0x4] sm:$0xf]
    %v286 = vld [vmem:[#allocation9 + $0x8] sm:$0xf]
    %v287 = vld [vmem:[#allocation9 + $0xc] sm:$0xf]
    %v292 = vunpack.c.l.b16 %v284
    %v293 = vunpack.c.l.b16 %v285
    %v294 = vunpack.c.l.b16 %v286
    %v295 = vunpack.c.l.b16 %v287
    %v296 = vpack.c.b16 %v293, %v292
    %v297 = vpack.c.b16 %v295, %v294
    %vm300 = vcmask 261120
    %v302 = vsel %vm300, 0, 0
    %304 = vmatprep.subr.bf16.mxu0 0
    %305 = vmatpush1.bf16.msra.mxu0 %v296
    %306 = vmatprep.subr.bf16.mxu0 0
    %307 = vmatpush1.bf16.msra.mxu0 %v297
    %308 = vmatprep.subr.bf16.mxu0 0
    %309 = vmatpush1.bf16.msra.mxu0 0
    %310 = vmatprep.subr.bf16.mxu0 0
    %311 = vmatpush1.bf16.msra.mxu0 0
    %312 = vmatprep.subr.bf16.mxu0 0
    %313 = vmatpush1.bf16.msra.mxu0 0
    %314 = vmatprep.subr.bf16.mxu0 0
    %315 = vmatpush1.bf16.msra.mxu0 0
    %316 = vmatprep.subr.bf16.mxu0 0
    %317 = vmatpush1.bf16.msra.mxu0 0
    %318 = vmatprep.subr.bf16.mxu0 0
    %319 = vmatpush1.bf16.msra.mxu0 0
    %320 = vmatprep.subr.bf16.mxu0 0
    %321 = vmatpush1.bf16.msra.mxu0 0
    %322 = vmatprep.subr.bf16.mxu0 0
    %323 = vmatpush1.bf16.msra.mxu0 0
    %324 = vmatprep.subr.bf16.mxu0 0
    %325 = vmatpush1.bf16.msra.mxu0 0
    %326 = vmatprep.subr.bf16.mxu0 0
    %327 = vmatpush1.bf16.msra.mxu0 0
    %328 = vmatprep.subr.bf16.mxu0 0
    %329 = vmatpush1.bf16.msra.mxu0 0
    %330 = vmatprep.subr.bf16.mxu0 0
    %331 = vmatpush1.bf16.msra.mxu0 0
    %332 = vmatprep.subr.bf16.mxu0 0
    %333 = vmatpush1.bf16.msra.mxu0 0
    %334 = vmatprep.subr.bf16.mxu0 0
    %335 = vmatpush1.bf16.msra.mxu0 0
    %336 = vmatprep.mubr.bf16.mxu0 0
    %337 = vmatmul.mubr.bf16.gmra.mrb[0].mxu0 %v302
    %v338 = vpop.f32.mrb[0].mxu0
    %v339 = vadd.f32 0.0, %v338
    %v340 = vpop.f32.mrb[0].mxu0
    %v341 = vpop.f32.mrb[0].mxu0
    %v342 = vadd.f32 0.0, %v341
    %v343 = vpop.f32.mrb[0].mxu0
    %344 = vdwg.mxu0
    %v345 = vadd.f32 %v282, %v339
    %v346 = vadd.f32 %v283, %v342
    %v347 = vmul.f32 %v345, 0.5
    %v348 = vmul.f32 %v346, 0.5
    %v349 = vsel %vm281, %v345, %v347
    %v350 = vsel %vm281, %v346, %v348
    %v351 = vtanh.pop %v349
    %v352 = vtanh.pop %v350
    %v353 = vmul.f32 %v351, 0.5
    %v354 = vmul.f32 %v352, 0.5
    %v355 = vadd.f32 %v353, 0.5
    %v356 = vadd.f32 %v354, 0.5
    %v357 = vsel %vm281, %v351, %v355
    %v358 = vsel %vm281, %v352, %v356
    %v359 = vmul.f32 %v357, 0.0
    %v360 = vmul.f32 %v358, 0.0
    %363 = vrot.lane.b32.xlu0 %v357, 64
    %v364 = vpop.permute.xlu0 %363
    %365 = vrot.lane.b32.xlu0 %v358, 64
    %v366 = vpop.permute.xlu0 %365
    %v369 = vmul.f32 %v357, %v364
    %v370 = vmul.f32 %v358, %v366
    %373 = vrot.lane.b32.xlu0 %v369, 32
    %v374 = vpop.permute.xlu0 %373
    %375 = vrot.lane.b32.xlu0 %v370, 32
    %v376 = vpop.permute.xlu0 %375
    %v379 = vadd.f32 %v359, %v374
    %v380 = vadd.f32 %v360, %v376
    %v381 = vtanh.pop %v379
    %v382 = vtanh.pop %v380
    %385 = vrot.lane.b32.xlu0 %v381, 64
    %v386 = vpop.permute.xlu0 %385
    %387 = vrot.lane.b32.xlu0 %v382, 64
    %v388 = vpop.permute.xlu0 %387
    %v391 = vmul.f32 %v357, %v386
    %v392 = vmul.f32 %v358, %v388
    %v393 = vld [vmem:[%s4] sm:$0x1]
    %v395 = vlaneseq
    %v396 = vshrl.u32 %v395, 7
    %v397 = vsub.s32 0, %v396
    %v398 = vrot.slane %v393, %v397
    %399 = vrot.lane.b32.xlu0 %v398, 96
    %v400 = vpop.permute.xlu0 %399
    %v402 = vmul.f32 %v391, %v400
    %v403 = vmul.f32 %v392, %v400
    %v404 = vadd.f32 %v402, 0.0
    %v405 = vadd.f32 %v403, 0.0
    %v406 = vld [vmem:[#allocation2 + $0x10] sm:$0xff]
    %v407 = vld [vmem:[#allocation2 + $0x18] sm:$0xff]
    %v408 = vpack.c.bf16 %v392, %v391
    %410 = vrot.lane.b32.xlu0 %v408, 32
    %v411 = vpop.permute.xlu0 %410
    %v413 = vsel %vm300, %v411, 0
    %415 = vmatprep.subr.bf16.mxu0 0
    %416 = vmatpush1.bf16.msra.mxu0 %v296
    %417 = vmatprep.subr.bf16.mxu0 0
    %418 = vmatpush1.bf16.msra.mxu0 %v297
    %419 = vmatprep.subr.bf16.mxu0 0
    %420 = vmatpush1.bf16.msra.mxu0 0
    %421 = vmatprep.subr.bf16.mxu0 0
    %422 = vmatpush1.bf16.msra.mxu0 0
    %423 = vmatprep.subr.bf16.mxu0 0
    %424 = vmatpush1.bf16.msra.mxu0 0
    %425 = vmatprep.subr.bf16.mxu0 0
    %426 = vmatpush1.bf16.msra.mxu0 0
    %427 = vmatprep.subr.bf16.mxu0 0
    %428 = vmatpush1.bf16.msra.mxu0 0
    %429 = vmatprep.subr.bf16.mxu0 0
    %430 = vmatpush1.bf16.msra.mxu0 0
    %431 = vmatprep.subr.bf16.mxu0 0
    %432 = vmatpush1.bf16.msra.mxu0 0
    %433 = vmatprep.subr.bf16.mxu0 0
    %434 = vmatpush1.bf16.msra.mxu0 0
    %435 = vmatprep.subr.bf16.mxu0 0
    %436 = vmatpush1.bf16.msra.mxu0 0
    %437 = vmatprep.subr.bf16.mxu0 0
    %438 = vmatpush1.bf16.msra.mxu0 0
    %439 = vmatprep.subr.bf16.mxu0 0
    %440 = vmatpush1.bf16.msra.mxu0 0
    %441 = vmatprep.subr.bf16.mxu0 0
    %442 = vmatpush1.bf16.msra.mxu0 0
    %443 = vmatprep.subr.bf16.mxu0 0
    %444 = vmatpush1.bf16.msra.mxu0 0
    %445 = vmatprep.subr.bf16.mxu0 0
    %446 = vmatpush1.bf16.msra.mxu0 0
    %447 = vmatprep.mubr.bf16.mxu0 0
    %448 = vmatmul.mubr.bf16.gmra.mrb[0].mxu0 %v413
    %v449 = vpop.f32.mrb[0].mxu0
    %v450 = vadd.f32 0.0, %v449
    %v451 = vpop.f32.mrb[0].mxu0
    %v452 = vpop.f32.mrb[0].mxu0
    %v453 = vadd.f32 0.0, %v452
    %v454 = vpop.f32.mrb[0].mxu0
    %455 = vdwg.mxu0
    %v456 = vadd.f32 %v406, %v450
    %v457 = vadd.f32 %v407, %v453
    %v458 = vmul.f32 %v456, 0.5
    %v459 = vmul.f32 %v457, 0.5
    %v460 = vsel %vm281, %v456, %v458
    %v461 = vsel %vm281, %v457, %v459
    %v462 = vtanh.pop %v460
    %v463 = vtanh.pop %v461
    %v464 = vmul.f32 %v462, 0.5
    %v465 = vmul.f32 %v463, 0.5
    %v466 = vadd.f32 %v464, 0.5
    %v467 = vadd.f32 %v465, 0.5
    %v468 = vsel %vm281, %v462, %v466
    %v469 = vsel %vm281, %v463, %v467
    %v470 = vmul.f32 %v468, %v379
    %v471 = vmul.f32 %v469, %v380
    %474 = vrot.lane.b32.xlu0 %v468, 64
    %v475 = vpop.permute.xlu0 %474
    %476 = vrot.lane.b32.xlu0 %v469, 64
    %v477 = vpop.permute.xlu0 %476
    %v480 = vmul.f32 %v468, %v475
    %v481 = vmul.f32 %v469, %v477
    %484 = vrot.lane.b32.xlu0 %v480, 32
    %v485 = vpop.permute.xlu0 %484
    %486 = vrot.lane.b32.xlu0 %v481, 32
    %v487 = vpop.permute.xlu0 %486
    %v490 = vadd.f32 %v470, %v485
    %v491 = vadd.f32 %v471, %v487
    %v492 = vtanh.pop %v490
    %v493 = vtanh.pop %v491
    %496 = vrot.lane.b32.xlu0 %v492, 64
    %v497 = vpop.permute.xlu0 %496
    %498 = vrot.lane.b32.xlu0 %v493, 64
    %v499 = vpop.permute.xlu0 %498
    %v502 = vmul.f32 %v468, %v497
    %v503 = vmul.f32 %v469, %v499
    %s504 = scalar_lea.vmem %s4, 1
    %v505 = vld [vmem:[%s504] sm:$0x1]
    %v507 = vlaneseq
    %v508 = vshrl.u32 %v507, 7
    %v509 = vsub.s32 0, %v508
    %v510 = vrot.slane %v505, %v509
    %511 = vrot.lane.b32.xlu0 %v510, 96
    %v512 = vpop.permute.xlu0 %511
    %v514 = vmul.f32 %v502, %v512
    %v515 = vmul.f32 %v503, %v512
    %v516 = vadd.f32 %v404, %v514
    %v517 = vadd.f32 %v405, %v515
    %v518 = vld [vmem:[#allocation2 + $0x20] sm:$0xff]
    %v519 = vld [vmem:[#allocation2 + $0x28] sm:$0xff]
    %v520 = vpack.c.bf16 %v503, %v502
    %522 = vrot.lane.b32.xlu0 %v520, 32
    %v523 = vpop.permute.xlu0 %522
    %v525 = vsel %vm300, %v523, 0
    %527 = vmatprep.subr.bf16.mxu0 0
    %528 = vmatpush1.bf16.msra.mxu0 %v296
    %529 = vmatprep.subr.bf16.mxu0 0
    %530 = vmatpush1.bf16.msra.mxu0 %v297
    %531 = vmatprep.subr.bf16.mxu0 0
    %532 = vmatpush1.bf16.msra.mxu0 0
    %533 = vmatprep.subr.bf16.mxu0 0
    %534 = vmatpush1.bf16.msra.mxu0 0
    %535 = vmatprep.subr.bf16.mxu0 0
    %536 = vmatpush1.bf16.msra.mxu0 0
    %537 = vmatprep.subr.bf16.mxu0 0
    %538 = vmatpush1.bf16.msra.mxu0 0
    %539 = vmatprep.subr.bf16.mxu0 0
    %540 = vmatpush1.bf16.msra.mxu0 0
    %541 = vmatprep.subr.bf16.mxu0 0
    %542 = vmatpush1.bf16.msra.mxu0 0
    %543 = vmatprep.subr.bf16.mxu0 0
    %544 = vmatpush1.bf16.msra.mxu0 0
    %545 = vmatprep.subr.bf16.mxu0 0
    %546 = vmatpush1.bf16.msra.mxu0 0
    %547 = vmatprep.subr.bf16.mxu0 0
    %548 = vmatpush1.bf16.msra.mxu0 0
    %549 = vmatprep.subr.bf16.mxu0 0
    %550 = vmatpush1.bf16.msra.mxu0 0
    %551 = vmatprep.subr.bf16.mxu0 0
    %552 = vmatpush1.bf16.msra.mxu0 0
    %553 = vmatprep.subr.bf16.mxu0 0
    %554 = vmatpush1.bf16.msra.mxu0 0
    %555 = vmatprep.subr.bf16.mxu0 0
    %556 = vmatpush1.bf16.msra.mxu0 0
    %557 = vmatprep.subr.bf16.mxu0 0
    %558 = vmatpush1.bf16.msra.mxu0 0
    %559 = vmatprep.mubr.bf16.mxu0 0
    %560 = vmatmul.mubr.bf16.gmra.mrb[0].mxu0 %v525
    %v561 = vpop.f32.mrb[0].mxu0
    %v562 = vadd.f32 0.0, %v561
    %v563 = vpop.f32.mrb[0].mxu0
    %v564 = vpop.f32.mrb[0].mxu0
    %v565 = vadd.f32 0.0, %v564
    %v566 = vpop.f32.mrb[0].mxu0
    %567 = vdwg.mxu0
    %v568 = vadd.f32 %v518, %v562
    %v569 = vadd.f32 %v519, %v565
    %v570 = vmul.f32 %v568, 0.5
    %v571 = vmul.f32 %v569, 0.5
    %v572 = vsel %vm281, %v568, %v570
    %v573 = vsel %vm281, %v569, %v571
    %v574 = vtanh.pop %v572
    %v575 = vtanh.pop %v573
    %v576 = vmul.f32 %v574, 0.5
    %v577 = vmul.f32 %v575, 0.5
    %v578 = vadd.f32 %v576, 0.5
    %v579 = vadd.f32 %v577, 0.5
    %v580 = vsel %vm281, %v574, %v578
    %v581 = vsel %vm281, %v575, %v579
    %v582 = vmul.f32 %v580, %v490
    %v583 = vmul.f32 %v581, %v491
    %586 = vrot.lane.b32.xlu0 %v580, 64
    %v587 = vpop.permute.xlu0 %586
    %588 = vrot.lane.b32.xlu0 %v581, 64
    %v589 = vpop.permute.xlu0 %588
    %v592 = vmul.f32 %v580, %v587
    %v593 = vmul.f32 %v581, %v589
    %596 = vrot.lane.b32.xlu0 %v592, 32
    %v597 = vpop.permute.xlu0 %596
    %598 = vrot.lane.b32.xlu0 %v593, 32
    %v599 = vpop.permute.xlu0 %598
    %v602 = vadd.f32 %v582, %v597
    %v603 = vadd.f32 %v583, %v599
    %v604 = vtanh.pop %v602
    %v605 = vtanh.pop %v603
    %608 = vrot.lane.b32.xlu0 %v604, 64
    %v609 = vpop.permute.xlu0 %608
    %610 = vrot.lane.b32.xlu0 %v605, 64
    %v611 = vpop.permute.xlu0 %610
    %v614 = vmul.f32 %v580, %v609
    %v615 = vmul.f32 %v581, %v611
    %s616 = scalar_lea.vmem %s4, 2
    %v617 = vld [vmem:[%s616] sm:$0x1]
    %v619 = vlaneseq
    %v620 = vshrl.u32 %v619, 7
    %v621 = vsub.s32 0, %v620
    %v622 = vrot.slane %v617, %v621
    %623 = vrot.lane.b32.xlu0 %v622, 96
    %v624 = vpop.permute.xlu0 %623
    %v626 = vmul.f32 %v614, %v624
    %v627 = vmul.f32 %v615, %v624
    %v628 = vadd.f32 %v516, %v626
    %v629 = vadd.f32 %v517, %v627
    %v630 = vld [vmem:[#allocation2 + $0x30] sm:$0xff]
    %v631 = vld [vmem:[#allocation2 + $0x38] sm:$0xff]
    %v632 = vpack.c.bf16 %v615, %v614
    %634 = vrot.lane.b32.xlu0 %v632, 32
    %v635 = vpop.permute.xlu0 %634
    %v637 = vsel %vm300, %v635, 0
    %639 = vmatprep.subr.bf16.mxu0 0
    %640 = vmatpush1.bf16.msra.mxu0 %v296
    %641 = vmatprep.subr.bf16.mxu0 0
    %642 = vmatpush1.bf16.msra.mxu0 %v297
    %643 = vmatprep.subr.bf16.mxu0 0
    %644 = vmatpush1.bf16.msra.mxu0 0
    %645 = vmatprep.subr.bf16.mxu0 0
    %646 = vmatpush1.bf16.msra.mxu0 0
    %647 = vmatprep.subr.bf16.mxu0 0
    %648 = vmatpush1.bf16.msra.mxu0 0
    %649 = vmatprep.subr.bf16.mxu0 0
    %650 = vmatpush1.bf16.msra.mxu0 0
    %651 = vmatprep.subr.bf16.mxu0 0
    %652 = vmatpush1.bf16.msra.mxu0 0
    %653 = vmatprep.subr.bf16.mxu0 0
    %654 = vmatpush1.bf16.msra.mxu0 0
    %655 = vmatprep.subr.bf16.mxu0 0
    %656 = vmatpush1.bf16.msra.mxu0 0
    %657 = vmatprep.subr.bf16.mxu0 0
    %658 = vmatpush1.bf16.msra.mxu0 0
    %659 = vmatprep.subr.bf16.mxu0 0
    %660 = vmatpush1.bf16.msra.mxu0 0
    %661 = vmatprep.subr.bf16.mxu0 0
    %662 = vmatpush1.bf16.msra.mxu0 0
    %663 = vmatprep.subr.bf16.mxu0 0
    %664 = vmatpush1.bf16.msra.mxu0 0
    %665 = vmatprep.subr.bf16.mxu0 0
    %666 = vmatpush1.bf16.msra.mxu0 0
    %667 = vmatprep.subr.bf16.mxu0 0
    %668 = vmatpush1.bf16.msra.mxu0 0
    %669 = vmatprep.subr.bf16.mxu0 0
    %670 = vmatpush1.bf16.msra.mxu0 0
    %671 = vmatprep.mubr.bf16.mxu0 0
    %672 = vmatmul.mubr.bf16.gmra.mrb[0].mxu0 %v637
    %v673 = vpop.f32.mrb[0].mxu0
    %v674 = vadd.f32 0.0, %v673
    %v675 = vpop.f32.mrb[0].mxu0
    %v676 = vpop.f32.mrb[0].mxu0
    %v677 = vadd.f32 0.0, %v676
    %v678 = vpop.f32.mrb[0].mxu0
    %679 = vdwg.mxu0
    %v680 = vadd.f32 %v630, %v674
    %v681 = vadd.f32 %v631, %v677
    %v682 = vmul.f32 %v680, 0.5
    %v683 = vmul.f32 %v681, 0.5
    %v684 = vsel %vm281, %v680, %v682
    %v685 = vsel %vm281, %v681, %v683
    %v686 = vtanh.pop %v684
    %v687 = vtanh.pop %v685
    %v688 = vmul.f32 %v686, 0.5
    %v689 = vmul.f32 %v687, 0.5
    %v690 = vadd.f32 %v688, 0.5
    %v691 = vadd.f32 %v689, 0.5
    %v692 = vsel %vm281, %v686, %v690
    %v693 = vsel %vm281, %v687, %v691
    %v694 = vmul.f32 %v692, %v602
    %v695 = vmul.f32 %v693, %v603
    %698 = vrot.lane.b32.xlu0 %v692, 64
    %v699 = vpop.permute.xlu0 %698
    %700 = vrot.lane.b32.xlu0 %v693, 64
    %v701 = vpop.permute.xlu0 %700
    %v704 = vmul.f32 %v692, %v699
    %v705 = vmul.f32 %v693, %v701
    %708 = vrot.lane.b32.xlu0 %v704, 32
    %v709 = vpop.permute.xlu0 %708
    %710 = vrot.lane.b32.xlu0 %v705, 32
    %v711 = vpop.permute.xlu0 %710
    %v714 = vadd.f32 %v694, %v709
    %v715 = vadd.f32 %v695, %v711
    %v716 = vtanh.pop %v714
    %v717 = vtanh.pop %v715
    %720 = vrot.lane.b32.xlu0 %v716, 64
    %v721 = vpop.permute.xlu0 %720
    %722 = vrot.lane.b32.xlu0 %v717, 64
    %v723 = vpop.permute.xlu0 %722
    %v726 = vmul.f32 %v692, %v721
    %v727 = vmul.f32 %v693, %v723
    %s728 = scalar_lea.vmem %s4, 3
    %v729 = vld [vmem:[%s728] sm:$0x1]
    %v731 = vlaneseq
    %v732 = vshrl.u32 %v731, 7
    %v733 = vsub.s32 0, %v732
    %v734 = vrot.slane %v729, %v733
    %735 = vrot.lane.b32.xlu0 %v734, 96
    %v736 = vpop.permute.xlu0 %735
    %v738 = vmul.f32 %v726, %v736
    %v739 = vmul.f32 %v727, %v736
    %v740 = vadd.f32 %v628, %v738
    %v741 = vadd.f32 %v629, %v739
    %v742 = vld [vmem:[#allocation2 + $0x40] sm:$0xff]
    %v743 = vld [vmem:[#allocation2 + $0x48] sm:$0xff]
    %v744 = vpack.c.bf16 %v727, %v726
    %746 = vrot.lane.b32.xlu0 %v744, 32
    %v747 = vpop.permute.xlu0 %746
    %v749 = vsel %vm300, %v747, 0
    %751 = vmatprep.subr.bf16.mxu0 0
    %752 = vmatpush1.bf16.msra.mxu0 %v296
    %753 = vmatprep.subr.bf16.mxu0 0
    %754 = vmatpush1.bf16.msra.mxu0 %v297
    %755 = vmatprep.subr.bf16.mxu0 0
    %756 = vmatpush1.bf16.msra.mxu0 0
    %757 = vmatprep.subr.bf16.mxu0 0
    %758 = vmatpush1.bf16.msra.mxu0 0
    %759 = vmatprep.subr.bf16.mxu0 0
    %760 = vmatpush1.bf16.msra.mxu0 0
    %761 = vmatprep.subr.bf16.mxu0 0
    %762 = vmatpush1.bf16.msra.mxu0 0
    %763 = vmatprep.subr.bf16.mxu0 0
    %764 = vmatpush1.bf16.msra.mxu0 0
    %765 = vmatprep.subr.bf16.mxu0 0
    %766 = vmatpush1.bf16.msra.mxu0 0
    %767 = vmatprep.subr.bf16.mxu0 0
    %768 = vmatpush1.bf16.msra.mxu0 0
    %769 = vmatprep.subr.bf16.mxu0 0
    %770 = vmatpush1.bf16.msra.mxu0 0
    %771 = vmatprep.subr.bf16.mxu0 0
    %772 = vmatpush1.bf16.msra.mxu0 0
    %773 = vmatprep.subr.bf16.mxu0 0
    %774 = vmatpush1.bf16.msra.mxu0 0
    %775 = vmatprep.subr.bf16.mxu0 0
    %776 = vmatpush1.bf16.msra.mxu0 0
    %777 = vmatprep.subr.bf16.mxu0 0
    %778 = vmatpush1.bf16.msra.mxu0 0
    %779 = vmatprep.subr.bf16.mxu0 0
    %780 = vmatpush1.bf16.msra.mxu0 0
    %781 = vmatprep.subr.bf16.mxu0 0
    %782 = vmatpush1.bf16.msra.mxu0 0
    %783 = vmatprep.mubr.bf16.mxu0 0
    %784 = vmatmul.mubr.bf16.gmra.mrb[0].mxu0 %v749
    %v785 = vpop.f32.mrb[0].mxu0
    %v786 = vadd.f32 0.0, %v785
    %v787 = vpop.f32.mrb[0].mxu0
    %v788 = vpop.f32.mrb[0].mxu0
    %v789 = vadd.f32 0.0, %v788
    %v790 = vpop.f32.mrb[0].mxu0
    %791 = vdwg.mxu0
    %v792 = vadd.f32 %v742, %v786
    %v793 = vadd.f32 %v743, %v789
    %v794 = vmul.f32 %v792, 0.5
    %v795 = vmul.f32 %v793, 0.5
    %v796 = vsel %vm281, %v792, %v794
    %v797 = vsel %vm281, %v793, %v795
    %v798 = vtanh.pop %v796
    %v799 = vtanh.pop %v797
    %v800 = vmul.f32 %v798, 0.5
    %v801 = vmul.f32 %v799, 0.5
    %v802 = vadd.f32 %v800, 0.5
    %v803 = vadd.f32 %v801, 0.5
    %v804 = vsel %vm281, %v798, %v802
    %v805 = vsel %vm281, %v799, %v803
    %v806 = vmul.f32 %v804, %v714
    %v807 = vmul.f32 %v805, %v715
    %810 = vrot.lane.b32.xlu0 %v804, 64
    %v811 = vpop.permute.xlu0 %810
    %812 = vrot.lane.b32.xlu0 %v805, 64
    %v813 = vpop.permute.xlu0 %812
    %v816 = vmul.f32 %v804, %v811
    %v817 = vmul.f32 %v805, %v813
    %820 = vrot.lane.b32.xlu0 %v816, 32
    %v821 = vpop.permute.xlu0 %820
    %822 = vrot.lane.b32.xlu0 %v817, 32
    %v823 = vpop.permute.xlu0 %822
    %v826 = vadd.f32 %v806, %v821
    %v827 = vadd.f32 %v807, %v823
    %v828 = vtanh.pop %v826
    %v829 = vtanh.pop %v827
    %832 = vrot.lane.b32.xlu0 %v828, 64
    %v833 = vpop.permute.xlu0 %832
    %834 = vrot.lane.b32.xlu0 %v829, 64
    %v835 = vpop.permute.xlu0 %834
    %v838 = vmul.f32 %v804, %v833
    %v839 = vmul.f32 %v805, %v835
    %s840 = scalar_lea.vmem %s4, 4
    %v841 = vld [vmem:[%s840] sm:$0x1]
    %v843 = vlaneseq
    %v844 = vshrl.u32 %v843, 7
    %v845 = vsub.s32 0, %v844
    %v846 = vrot.slane %v841, %v845
    %847 = vrot.lane.b32.xlu0 %v846, 96
    %v848 = vpop.permute.xlu0 %847
    %v850 = vmul.f32 %v838, %v848
    %v851 = vmul.f32 %v839, %v848
    %v852 = vadd.f32 %v740, %v850
    %v853 = vadd.f32 %v741, %v851
    %v854 = vld [vmem:[#allocation2 + $0x50] sm:$0xff]
    %v855 = vld [vmem:[#allocation2 + $0x58] sm:$0xff]
    %v856 = vpack.c.bf16 %v839, %v838
    %858 = vrot.lane.b32.xlu0 %v856, 32
    %v859 = vpop.permute.xlu0 %858
    %v861 = vsel %vm300, %v859, 0
    %863 = vmatprep.subr.bf16.mxu0 0
    %864 = vmatpush1.bf16.msra.mxu0 %v296
    %865 = vmatprep.subr.bf16.mxu0 0
    %866 = vmatpush1.bf16.msra.mxu0 %v297
    %867 = vmatprep.subr.bf16.mxu0 0
    %868 = vmatpush1.bf16.msra.mxu0 0
    %869 = vmatprep.subr.bf16.mxu0 0
    %870 = vmatpush1.bf16.msra.mxu0 0
    %871 = vmatprep.subr.bf16.mxu0 0
    %872 = vmatpush1.bf16.msra.mxu0 0
    %873 = vmatprep.subr.bf16.mxu0 0
    %874 = vmatpush1.bf16.msra.mxu0 0
    %875 = vmatprep.subr.bf16.mxu0 0
    %876 = vmatpush1.bf16.msra.mxu0 0
    %877 = vmatprep.subr.bf16.mxu0 0
    %878 = vmatpush1.bf16.msra.mxu0 0
    %879 = vmatprep.subr.bf16.mxu0 0
    %880 = vmatpush1.bf16.msra.mxu0 0
    %881 = vmatprep.subr.bf16.mxu0 0
    %882 = vmatpush1.bf16.msra.mxu0 0
    %883 = vmatprep.subr.bf16.mxu0 0
    %884 = vmatpush1.bf16.msra.mxu0 0
    %885 = vmatprep.subr.bf16.mxu0 0
    %886 = vmatpush1.bf16.msra.mxu0 0
    %887 = vmatprep.subr.bf16.mxu0 0
    %888 = vmatpush1.bf16.msra.mxu0 0
    %889 = vmatprep.subr.bf16.mxu0 0
    %890 = vmatpush1.bf16.msra.mxu0 0
    %891 = vmatprep.subr.bf16.mxu0 0
    %892 = vmatpush1.bf16.msra.mxu0 0
    %893 = vmatprep.subr.bf16.mxu0 0
    %894 = vmatpush1.bf16.msra.mxu0 0
    %895 = vmatprep.mubr.bf16.mxu0 0
    %896 = vmatmul.mubr.bf16.gmra.mrb[0].mxu0 %v861
    %v897 = vpop.f32.mrb[0].mxu0
    %v898 = vadd.f32 0.0, %v897
    %v899 = vpop.f32.mrb[0].mxu0
    %v900 = vpop.f32.mrb[0].mxu0
    %v901 = vadd.f32 0.0, %v900
    %v902 = vpop.f32.mrb[0].mxu0
    %903 = vdwg.mxu0
    %v904 = vadd.f32 %v854, %v898
    %v905 = vadd.f32 %v855, %v901
    %v906 = vmul.f32 %v904, 0.5
    %v907 = vmul.f32 %v905, 0.5
    %v908 = vsel %vm281, %v904, %v906
    %v909 = vsel %vm281, %v905, %v907
    %v910 = vtanh.pop %v908
    %v911 = vtanh.pop %v909
    %v912 = vmul.f32 %v910, 0.5
    %v913 = vmul.f32 %v911, 0.5
    %v914 = vadd.f32 %v912, 0.5
    %v915 = vadd.f32 %v913, 0.5
    %v916 = vsel %vm281, %v910, %v914
    %v917 = vsel %vm281, %v911, %v915
    %v918 = vmul.f32 %v916, %v826
    %v919 = vmul.f32 %v917, %v827
    %922 = vrot.lane.b32.xlu0 %v916, 64
    %v923 = vpop.permute.xlu0 %922
    %924 = vrot.lane.b32.xlu0 %v917, 64
    %v925 = vpop.permute.xlu0 %924
    %v928 = vmul.f32 %v916, %v923
    %v929 = vmul.f32 %v917, %v925
    %932 = vrot.lane.b32.xlu0 %v928, 32
    %v933 = vpop.permute.xlu0 %932
    %934 = vrot.lane.b32.xlu0 %v929, 32
    %v935 = vpop.permute.xlu0 %934
    %v938 = vadd.f32 %v918, %v933
    %v939 = vadd.f32 %v919, %v935
    %v940 = vtanh.pop %v938
    %v941 = vtanh.pop %v939
    %944 = vrot.lane.b32.xlu0 %v940, 64
    %v945 = vpop.permute.xlu0 %944
    %946 = vrot.lane.b32.xlu0 %v941, 64
    %v947 = vpop.permute.xlu0 %946
    %v950 = vmul.f32 %v916, %v945
    %v951 = vmul.f32 %v917, %v947
    %s952 = scalar_lea.vmem %s4, 5
    %v953 = vld [vmem:[%s952] sm:$0x1]
    %v955 = vlaneseq
    %v956 = vshrl.u32 %v955, 7
    %v957 = vsub.s32 0, %v956
    %v958 = vrot.slane %v953, %v957
    %959 = vrot.lane.b32.xlu0 %v958, 96
    %v960 = vpop.permute.xlu0 %959
    %v962 = vmul.f32 %v950, %v960
    %v963 = vmul.f32 %v951, %v960
    %v964 = vadd.f32 %v852, %v962
    %v965 = vadd.f32 %v853, %v963
    %v966 = vld [vmem:[#allocation2 + $0x60] sm:$0xff]
    %v967 = vld [vmem:[#allocation2 + $0x68] sm:$0xff]
    %v968 = vpack.c.bf16 %v951, %v950
    %970 = vrot.lane.b32.xlu0 %v968, 32
    %v971 = vpop.permute.xlu0 %970
    %v973 = vsel %vm300, %v971, 0
    %975 = vmatprep.subr.bf16.mxu0 0
    %976 = vmatpush1.bf16.msra.mxu0 %v296
    %977 = vmatprep.subr.bf16.mxu0 0
    %978 = vmatpush1.bf16.msra.mxu0 %v297
    %979 = vmatprep.subr.bf16.mxu0 0
    %980 = vmatpush1.bf16.msra.mxu0 0
    %981 = vmatprep.subr.bf16.mxu0 0
    %982 = vmatpush1.bf16.msra.mxu0 0
    %983 = vmatprep.subr.bf16.mxu0 0
    %984 = vmatpush1.bf16.msra.mxu0 0
    %985 = vmatprep.subr.bf16.mxu0 0
    %986 = vmatpush1.bf16.msra.mxu0 0
    %987 = vmatprep.subr.bf16.mxu0 0
    %988 = vmatpush1.bf16.msra.mxu0 0
    %989 = vmatprep.subr.bf16.mxu0 0
    %990 = vmatpush1.bf16.msra.mxu0 0
    %991 = vmatprep.subr.bf16.mxu0 0
    %992 = vmatpush1.bf16.msra.mxu0 0
    %993 = vmatprep.subr.bf16.mxu0 0
    %994 = vmatpush1.bf16.msra.mxu0 0
    %995 = vmatprep.subr.bf16.mxu0 0
    %996 = vmatpush1.bf16.msra.mxu0 0
    %997 = vmatprep.subr.bf16.mxu0 0
    %998 = vmatpush1.bf16.msra.mxu0 0
    %999 = vmatprep.subr.bf16.mxu0 0
    %1000 = vmatpush1.bf16.msra.mxu0 0
    %1001 = vmatprep.subr.bf16.mxu0 0
    %1002 = vmatpush1.bf16.msra.mxu0 0
    %1003 = vmatprep.subr.bf16.mxu0 0
    %1004 = vmatpush1.bf16.msra.mxu0 0
    %1005 = vmatprep.subr.bf16.mxu0 0
    %1006 = vmatpush1.bf16.msra.mxu0 0
    %1007 = vmatprep.mubr.bf16.mxu0 0
    %1008 = vmatmul.mubr.bf16.gmra.mrb[0].mxu0 %v973
    %v1009 = vpop.f32.mrb[0].mxu0
    %v1010 = vadd.f32 0.0, %v1009
    %v1011 = vpop.f32.mrb[0].mxu0
    %v1012 = vpop.f32.mrb[0].mxu0
    %v1013 = vadd.f32 0.0, %v1012
    %v1014 = vpop.f32.mrb[0].mxu0
    %1015 = vdwg.mxu0
    %v1016 = vadd.f32 %v966, %v1010
    %v1017 = vadd.f32 %v967, %v1013
    %v1018 = vmul.f32 %v1016, 0.5
    %v1019 = vmul.f32 %v1017, 0.5
    %v1020 = vsel %vm281, %v1016, %v1018
    %v1021 = vsel %vm281, %v1017, %v1019
    %v1022 = vtanh.pop %v1020
    %v1023 = vtanh.pop %v1021
    %v1024 = vmul.f32 %v1022, 0.5
    %v1025 = vmul.f32 %v1023, 0.5
    %v1026 = vadd.f32 %v1024, 0.5
    %v1027 = vadd.f32 %v1025, 0.5
    %v1028 = vsel %vm281, %v1022, %v1026
    %v1029 = vsel %vm281, %v1023, %v1027
    %v1030 = vmul.f32 %v1028, %v938
    %v1031 = vmul.f32 %v1029, %v939
    %1034 = vrot.lane.b32.xlu0 %v1028, 64
    %v1035 = vpop.permute.xlu0 %1034
    %1036 = vrot.lane.b32.xlu0 %v1029, 64
    %v1037 = vpop.permute.xlu0 %1036
    %v1040 = vmul.f32 %v1028, %v1035
    %v1041 = vmul.f32 %v1029, %v1037
    %1044 = vrot.lane.b32.xlu0 %v1040, 32
    %v1045 = vpop.permute.xlu0 %1044
    %1046 = vrot.lane.b32.xlu0 %v1041, 32
    %v1047 = vpop.permute.xlu0 %1046
    %v1050 = vadd.f32 %v1030, %v1045
    %v1051 = vadd.f32 %v1031, %v1047
    %v1052 = vtanh.pop %v1050
    %v1053 = vtanh.pop %v1051
    %1056 = vrot.lane.b32.xlu0 %v1052, 64
    %v1057 = vpop.permute.xlu0 %1056
    %1058 = vrot.lane.b32.xlu0 %v1053, 64
    %v1059 = vpop.permute.xlu0 %1058
    %v1062 = vmul.f32 %v1028, %v1057
    %v1063 = vmul.f32 %v1029, %v1059
    %s1064 = scalar_lea.vmem %s4, 6
    %v1065 = vld [vmem:[%s1064] sm:$0x1]
    %v1067 = vlaneseq
    %v1068 = vshrl.u32 %v1067, 7
    %v1069 = vsub.s32 0, %v1068
    %v1070 = vrot.slane %v1065, %v1069
    %1071 = vrot.lane.b32.xlu0 %v1070, 96
    %v1072 = vpop.permute.xlu0 %1071
    %v1074 = vmul.f32 %v1062, %v1072
    %v1075 = vmul.f32 %v1063, %v1072
    %v1076 = vadd.f32 %v964, %v1074
    %v1077 = vadd.f32 %v965, %v1075
    %v1078 = vld [vmem:[#allocation2 + $0x70] sm:$0xff]
    %v1079 = vld [vmem:[#allocation2 + $0x78] sm:$0xff]
    %v1080 = vpack.c.bf16 %v1063, %v1062
    %1082 = vrot.lane.b32.xlu0 %v1080, 32
    %v1083 = vpop.permute.xlu0 %1082
    %v1085 = vsel %vm300, %v1083, 0
    %1087 = vmatprep.subr.bf16.mxu0 0
    %1088 = vmatpush1.bf16.msra.mxu0 %v296
    %1089 = vmatprep.subr.bf16.mxu0 0
    %1090 = vmatpush1.bf16.msra.mxu0 %v297
    %1091 = vmatprep.subr.bf16.mxu0 0
    %1092 = vmatpush1.bf16.msra.mxu0 0
    %1093 = vmatprep.subr.bf16.mxu0 0
    %1094 = vmatpush1.bf16.msra.mxu0 0
    %1095 = vmatprep.subr.bf16.mxu0 0
    %1096 = vmatpush1.bf16.msra.mxu0 0
    %1097 = vmatprep.subr.bf16.mxu0 0
    %1098 = vmatpush1.bf16.msra.mxu0 0
    %1099 = vmatprep.subr.bf16.mxu0 0
    %1100 = vmatpush1.bf16.msra.mxu0 0
    %1101 = vmatprep.subr.bf16.mxu0 0
    %1102 = vmatpush1.bf16.msra.mxu0 0
    %1103 = vmatprep.subr.bf16.mxu0 0
    %1104 = vmatpush1.bf16.msra.mxu0 0
    %1105 = vmatprep.subr.bf16.mxu0 0
    %1106 = vmatpush1.bf16.msra.mxu0 0
    %1107 = vmatprep.subr.bf16.mxu0 0
    %1108 = vmatpush1.bf16.msra.mxu0 0
    %1109 = vmatprep.subr.bf16.mxu0 0
    %1110 = vmatpush1.bf16.msra.mxu0 0
    %1111 = vmatprep.subr.bf16.mxu0 0
    %1112 = vmatpush1.bf16.msra.mxu0 0
    %1113 = vmatprep.subr.bf16.mxu0 0
    %1114 = vmatpush1.bf16.msra.mxu0 0
    %1115 = vmatprep.subr.bf16.mxu0 0
    %1116 = vmatpush1.bf16.msra.mxu0 0
    %1117 = vmatprep.subr.bf16.mxu0 0
    %1118 = vmatpush1.bf16.msra.mxu0 0
    %1119 = vmatprep.mubr.bf16.mxu0 0
    %1120 = vmatmul.mubr.bf16.gmra.mrb[0].mxu0 %v1085
    %v1121 = vpop.f32.mrb[0].mxu0
    %v1122 = vadd.f32 0.0, %v1121
    %v1123 = vpop.f32.mrb[0].mxu0
    %v1124 = vpop.f32.mrb[0].mxu0
    %v1125 = vadd.f32 0.0, %v1124
    %v1126 = vpop.f32.mrb[0].mxu0
    %1127 = vdwg.mxu0
    %v1128 = vadd.f32 %v1078, %v1122
    %v1129 = vadd.f32 %v1079, %v1125
    %v1130 = vmul.f32 %v1128, 0.5
    %v1131 = vmul.f32 %v1129, 0.5
    %v1132 = vsel %vm281, %v1128, %v1130
    %v1133 = vsel %vm281, %v1129, %v1131
    %v1134 = vtanh.pop %v1132
    %v1135 = vtanh.pop %v1133
    %v1136 = vmul.f32 %v1134, 0.5
    %v1137 = vmul.f32 %v1135, 0.5
    %v1138 = vadd.f32 %v1136, 0.5
    %v1139 = vadd.f32 %v1137, 0.5
    %v1140 = vsel %vm281, %v1134, %v1138
    %v1141 = vsel %vm281, %v1135, %v1139
    %v1142 = vmul.f32 %v1140, %v1050
    %v1143 = vmul.f32 %v1141, %v1051
    %1146 = vrot.lane.b32.xlu0 %v1140, 64
    %v1147 = vpop.permute.xlu0 %1146
    %1148 = vrot.lane.b32.xlu0 %v1141, 64
    %v1149 = vpop.permute.xlu0 %1148
    %v1152 = vmul.f32 %v1140, %v1147
    %v1153 = vmul.f32 %v1141, %v1149
    %1156 = vrot.lane.b32.xlu0 %v1152, 32
    %v1157 = vpop.permute.xlu0 %1156
    %1158 = vrot.lane.b32.xlu0 %v1153, 32
    %v1159 = vpop.permute.xlu0 %1158
    %v1162 = vadd.f32 %v1142, %v1157
    %v1163 = vadd.f32 %v1143, %v1159
    %v1164 = vtanh.pop %v1162
    %v1165 = vtanh.pop %v1163
    %1168 = vrot.lane.b32.xlu0 %v1164, 64
    %v1169 = vpop.permute.xlu0 %1168
    %1170 = vrot.lane.b32.xlu0 %v1165, 64
    %v1171 = vpop.permute.xlu0 %1170
    %v1174 = vmul.f32 %v1140, %v1169
    %v1175 = vmul.f32 %v1141, %v1171
    %s1176 = scalar_lea.vmem %s4, 7
    %v1177 = vld [vmem:[%s1176] sm:$0x1]
    %v1179 = vlaneseq
    %v1180 = vshrl.u32 %v1179, 7
    %v1181 = vsub.s32 0, %v1180
    %v1182 = vrot.slane %v1177, %v1181
    %1183 = vrot.lane.b32.xlu0 %v1182, 96
    %v1184 = vpop.permute.xlu0 %1183
    %v1186 = vmul.f32 %v1174, %v1184
    %v1187 = vmul.f32 %v1175, %v1184
    %v1188 = vadd.f32 %v1076, %v1186
    %v1189 = vadd.f32 %v1077, %v1187
    %v1190 = vld [vmem:[#allocation3] sm:$0x1]
    %1192 = vset.pattern.permute.xlu0 0
    %1193 = vperm.xlu0 %1192, %v1190
    %v1194 = vpop.permute.xlu0 %1193
    %v1196 = vlaneseq
    %v1197 = vshrl.u32 %v1196, 7
    %v1198 = vsub.s32 0, %v1197
    %v1199 = vrot.slane %v1194, %v1198
    %1202 = vrot.lane.b32.xlu0 %v1188, 32
    %v1203 = vpop.permute.xlu0 %1202
    %1204 = vrot.lane.b32.xlu0 %v1189, 32
    %v1205 = vpop.permute.xlu0 %1204
    %v1207 = vsel %vm300, 1.0, 0
    %v1209 = vsel %vm300, %v1203, 0
    %v1211 = vsel %vm300, %v1205, 0
    %1213 = vmatprep.subr.mxu0 0.0
    %1214 = vmatpush1.xpose.msra.mxu0 %v1209
    %1215 = vmatprep.subr.mxu0 0.0
    %1216 = vmatpush1.xpose.msra.mxu0 %v1211
    %1217 = vmatprep.subr.mxu0 0.0
    %1218 = vmatpush1.xpose.msra.mxu0 0.0
    %1219 = vmatprep.subr.mxu0 0.0
    %1220 = vmatpush1.xpose.msra.mxu0 0.0
    %1221 = vmatprep.subr.mxu0 0.0
    %1222 = vmatpush1.xpose.msra.mxu0 0.0
    %1223 = vmatprep.subr.mxu0 0.0
    %1224 = vmatpush1.xpose.msra.mxu0 0.0
    %1225 = vmatprep.subr.mxu0 0.0
    %1226 = vmatpush1.xpose.msra.mxu0 0.0
    %1227 = vmatprep.subr.mxu0 0.0
    %1228 = vmatpush1.xpose.msra.mxu0 0.0
    %1229 = vmatprep.subr.mxu0 0.0
    %1230 = vmatpush1.xpose.msra.mxu0 0.0
    %1231 = vmatprep.subr.mxu0 0.0
    %1232 = vmatpush1.xpose.msra.mxu0 0.0
    %1233 = vmatprep.subr.mxu0 0.0
    %1234 = vmatpush1.xpose.msra.mxu0 0.0
    %1235 = vmatprep.subr.mxu0 0.0
    %1236 = vmatpush1.xpose.msra.mxu0 0.0
    %1237 = vmatprep.subr.mxu0 0.0
    %1238 = vmatpush1.xpose.msra.mxu0 0.0
    %1239 = vmatprep.subr.mxu0 0.0
    %1240 = vmatpush1.xpose.msra.mxu0 0.0
    %1241 = vmatprep.subr.mxu0 0.0
    %1242 = vmatpush1.xpose.msra.mxu0 0.0
    %1243 = vmatprep.subr.mxu0 0.0
    %1244 = vmatpush1.xpose.msra.mxu0 0.0
    %1245 = vmatprep.subr.mxu0 0.0
    %1246 = vmatpush1.xpose.msra.mxu0 0.0
    %1247 = vmatprep.subr.mxu0 0.0
    %1248 = vmatpush1.xpose.msra.mxu0 0.0
    %1249 = vmatprep.subr.mxu0 0.0
    %1250 = vmatpush1.xpose.msra.mxu0 0.0
    %1251 = vmatprep.subr.mxu0 0.0
    %1252 = vmatpush1.xpose.msra.mxu0 0.0
    %1253 = vmatprep.subr.mxu0 0.0
    %1254 = vmatpush1.xpose.msra.mxu0 0.0
    %1255 = vmatprep.subr.mxu0 0.0
    %1256 = vmatpush1.xpose.msra.mxu0 0.0
    %1257 = vmatprep.subr.mxu0 0.0
    %1258 = vmatpush1.xpose.msra.mxu0 0.0
    %1259 = vmatprep.subr.mxu0 0.0
    %1260 = vmatpush1.xpose.msra.mxu0 0.0
    %1261 = vmatprep.subr.mxu0 0.0
    %1262 = vmatpush1.xpose.msra.mxu0 0.0
    %1263 = vmatprep.subr.mxu0 0.0
    %1264 = vmatpush1.xpose.msra.mxu0 0.0
    %1265 = vmatprep.subr.mxu0 0.0
    %1266 = vmatpush1.xpose.msra.mxu0 0.0
    %1267 = vmatprep.subr.mxu0 0.0
    %1268 = vmatpush1.xpose.msra.mxu0 0.0
    %1269 = vmatprep.subr.mxu0 0.0
    %1270 = vmatpush1.xpose.msra.mxu0 0.0
    %1271 = vmatprep.subr.mxu0 0.0
    %1272 = vmatpush1.xpose.msra.mxu0 0.0
    %1273 = vmatprep.subr.mxu0 0.0
    %1274 = vmatpush1.xpose.msra.mxu0 0.0
    %1275 = vmatprep.subr.mxu0 0.0
    %1276 = vmatpush1.xpose.msra.mxu0 0.0
    %1277 = vmatprep.mubr.f32.mxu0 0.0
    %1278 = vmatmul.mubr.f32.gmra.mrb[0].mxu0 %v1207
    %v1279 = vpop.f32.mrb[0].mxu0
    %v1280 = vadd.f32 %v1199, %v1279
    %v1281 = vpop.f32.mrb[0].mxu0
    %1282 = vdwg.mxu0
    %v1283 = vxor.u32 %v1280, 2147483648
    %v1284 = vmul.f32 %v1283, 1.442695
    %v1285 = vpow.pop %v1284
    %v1286 = vadd.f32 %v1285, 1.0
    %v1287 = vrcp.pop %v1286
    %v1288 = vmul.f32 1.0, %v1287
    %vm1289 = vcmask 122880
    %1290 = vst.msk [vmem:[#allocation10] sm:$0x1] %vm1289, %v1288
    // Predicated region
    $region38: #{tpu_custom_call.1} parent=1 // pred_check
      _
    $region39: #{tpu_custom_call.1} parent=1 // pred_check_branch
      %1292 = sbr.rel (0) target = $region41
    $region40: #{tpu_custom_call.1} parent=1 // pred_region
      %s1294 = ssub.s32 16, 16
      %1295 = vsyncadd [#allocation6], %s1294
      %s1297 = sshll.u32 [#allocation10], 4
      %s1298 = int_to_ptr.vmem [resolvable:$true] %s1297
      %1300 = dma.vmem_to_hbm [thread:$0]  %s1298, 16, %s6, [#allocation6]
    $region41: #{tpu_custom_call.1} parent=1 // pred_fallthru
      _
    // Predicated region
    $region42: #{tpu_custom_call.1} parent=1 // pred_check
      _
    $region43: #{tpu_custom_call.1} parent=1 // pred_check_branch
      %1302 = sbr.rel (0) target = $region45
    $region44: #{tpu_custom_call.1} parent=1 // pred_region
      %1303 = dma.done [#allocation6], 16
    $region45: #{tpu_custom_call.1} parent=1 // pred_fallthru
      _
    %1304 = vsyncpa [#allocation5], 1
    %1305 = vsyncpa [#allocation8], 1
    %1306 = vsyncpa [#allocation6], 1

</llo_original>
